<compile_context>
chip_gen: v7x
topology: tpu7x:2x2x1
jax: 0.10.0
libtpu: 0.0.40
codegen_flags: <defaults>
</compile_context>

<pallas_src>
import jax
import jax.numpy as jnp
from jax.experimental import pallas as pl
from jax.experimental.pallas import tpu as pltpu


def _round_up(x, m):
    return (x + m - 1) // m * m


def _mlp_kernel(x_ref, w1_ref, b1_ref, w2_ref, b2_ref, w3_ref, b3_ref, o_ref):
    # Fused 3-layer MLP. Dots: bf16 operands on the MXU, f32 accumulation.
    # Elementwise (bias add / ReLU / sigmoid): f32 on the VPU/EUP.
    x = x_ref[...].astype(jnp.bfloat16)                                  # in-kernel cast (free under DMA)

    h1 = jnp.dot(x, w1_ref[...], preferred_element_type=jnp.float32) + b1_ref[...]
    h1 = jnp.maximum(h1, 0.0)                                            # ReLU (f32)

    h2 = jnp.dot(h1.astype(jnp.bfloat16), w2_ref[...],
                 preferred_element_type=jnp.float32) + b2_ref[...]
    h2 = jnp.maximum(h2, 0.0)                                            # ReLU (f32)

    h3 = jnp.dot(h2.astype(jnp.bfloat16), w3_ref[...],
                 preferred_element_type=jnp.float32) + b3_ref[...]
    o_ref[...] = jax.nn.sigmoid(h3).astype(o_ref.dtype)                  # Sigmoid (f32) -> out dtype


def mlp_forward(x, params, *, tile_b=1024, out_dtype=jnp.bfloat16):
    """Run the fused MLP Pallas kernel.

    x: (B, input_dim) float32
    params: dict with w1 (D_in,128), b1 (1,128), w2 (128,64), b2 (1,64),
            w3 (64,D_out), b3 (1,D_out)   -- all float32
    out_dtype: dtype of the returned array (bf16 default per perf review).
    """
    w1, b1, w2, b2, w3, b3 = (params[k] for k in ("w1", "b1", "w2", "b2", "w3", "b3"))
    B, d_in = x.shape
    d_out = w3.shape[1]

    # bf16 matmul operands for the (small, fully-resident) weights; f32 biases.
    w1b, w2b, w3b = (w.astype(jnp.bfloat16) for w in (w1, w2, w3))
    b1f, b2f, b3f = (b.astype(jnp.float32) for b in (b1, b2, b3))

    # Batch tile: multiple of 256 (native (8,128)/(16,128) tiles, low per-step overhead);
    # when B is smaller than the tile, use a single snug 16-aligned block. No batch pad:
    # the last block may be partial (Pallas masks out-of-bounds output rows).
    tile_b = max(256, (int(tile_b) // 256) * 256)
    if B < tile_b:
        tile_b = max(16, _round_up(B, 16))
    grid = (pl.cdiv(B, tile_b),)

    # Weights/biases are tiny: keep each fully resident (same block every grid step,
    # so Pallas does not re-DMA them).
    def full(shape):
        return pl.BlockSpec(shape, lambda i: (0, 0))

    out = pl.pallas_call(
        _mlp_kernel,
        out_shape=jax.ShapeDtypeStruct((B, d_out), out_dtype),
        grid=grid,
        in_specs=[
            pl.BlockSpec((tile_b, d_in), lambda i: (i, 0)),   # x streamed over batch
            full(w1b.shape), full(b1f.shape),
            full(w2b.shape), full(b2f.shape),
            full(w3b.shape), full(b3f.shape),
        ],
        # Last dim = full array dim (d_out) => legal block, no zero-padded writeback.
        out_specs=pl.BlockSpec((tile_b, d_out), lambda i: (i, 0)),
        compiler_params=pltpu.CompilerParams(
            dimension_semantics=("parallel",),
        ),
    )(x, w1b, b1f, w2b, b2f, w3b, b3f)

    return out


def init_params(key, input_dim, output_dim):
    """Deterministic parameter init (Kaiming-uniform-ish like torch defaults)."""
    ks = jax.random.split(key, 6)

    def linear(kw, kb, fan_in, fan_out):
        bound = 1.0 / jnp.sqrt(fan_in)
        w = jax.random.uniform(kw, (fan_in, fan_out), jnp.float32, -bound, bound)
        b = jax.random.uniform(kb, (1, fan_out), jnp.float32, -bound, bound)
        return w, b

    w1, b1 = linear(ks[0], ks[1], input_dim, 128)
    w2, b2 = linear(ks[2], ks[3], 128, 64)
    w3, b3 = linear(ks[4], ks[5], 64, output_dim)
    return dict(w1=w1, b1=b1, w2=w2, b2=b2, w3=w3, b3=b3)


def _reference(x, p):
    h1 = jnp.maximum(x @ p["w1"] + p["b1"], 0.0)
    h2 = jnp.maximum(h1 @ p["w2"] + p["b2"], 0.0)
    return jax.nn.sigmoid(h2 @ p["w3"] + p["b3"])


if __name__ == "__main__":
    key = jax.random.PRNGKey(0)
    k_param, k_x = jax.random.split(key)

    batch, input_dim, output_dim = 512, 32, 8
    params = init_params(k_param, input_dim, output_dim)
    x = jax.random.normal(k_x, (batch, input_dim), jnp.float32)

    out = jax.block_until_ready(mlp_forward(x, params))
    ref = _reference(x, params)
    assert out.shape == (batch, output_dim)
    # bf16 matmul operands + bf16 output (f32 accumulation) => looser tolerance vs f32 ref.
    assert jnp.allclose(out.astype(jnp.float32), ref, atol=2e-2, rtol=2e-2), \
        "mismatch vs JAX reference"

    # Ragged-batch path (not a multiple of the tile size / not 256-aligned).
    x_r = x[:100]
    out_r = jax.block_until_ready(mlp_forward(x_r, params))
    assert out_r.shape == (100, output_dim)
    assert jnp.allclose(out_r.astype(jnp.float32), ref[:100], atol=2e-2, rtol=2e-2), \
        "ragged mismatch"

    print("KERNEL_OK")
</pallas_src>

<mosaic_0001>
module attributes {stable_mosaic.version = 11 : i64} {
  func.func @_mlp_kernel(%arg0: i32, %arg1: memref<512x32xf32, #tpu.memory_space<vmem>>, %arg2: memref<32x128xbf16, #tpu.memory_space<vmem>>, %arg3: memref<1x128xf32, #tpu.memory_space<vmem>>, %arg4: memref<128x64xbf16, #tpu.memory_space<vmem>>, %arg5: memref<1x64xf32, #tpu.memory_space<vmem>>, %arg6: memref<64x8xbf16, #tpu.memory_space<vmem>>, %arg7: memref<1x8xf32, #tpu.memory_space<vmem>>, %arg8: memref<512x8xbf16, #tpu.memory_space<vmem>>) attributes {dimension_semantics = [#tpu.dimension_semantics<parallel>], iteration_bounds = array<i64: 1>, scalar_prefetch = 0 : i64, scratch_operands = 0 : i64, tpu.core_type = #tpu.core_type<tc>, window_params = [{transform_indices = @transform_0, window_bounds = array<i64: 512, 32>}, {pipeline_mode = #tpu.pipeline_mode<synchronous>, transform_indices = @transform_1, window_bounds = array<i64: 32, 128>}, {pipeline_mode = #tpu.pipeline_mode<synchronous>, transform_indices = @transform_2, window_bounds = array<i64: 1, 128>}, {pipeline_mode = #tpu.pipeline_mode<synchronous>, transform_indices = @transform_3, window_bounds = array<i64: 128, 64>}, {pipeline_mode = #tpu.pipeline_mode<synchronous>, transform_indices = @transform_4, window_bounds = array<i64: 1, 64>}, {pipeline_mode = #tpu.pipeline_mode<synchronous>, transform_indices = @transform_5, window_bounds = array<i64: 64, 8>}, {pipeline_mode = #tpu.pipeline_mode<synchronous>, transform_indices = @transform_6, window_bounds = array<i64: 1, 8>}, {transform_indices = @transform_7, window_bounds = array<i64: 512, 8>}]} {
    %c0 = arith.constant 0 : index
    %c0_0 = arith.constant 0 : index
    %0 = vector.load %arg1[%c0, %c0_0] : memref<512x32xf32, #tpu.memory_space<vmem>>, vector<512x32xf32>
    %1 = arith.truncf %0 : vector<512x32xf32> to vector<512x32xbf16>
    %c0_1 = arith.constant 0 : index
    %c0_2 = arith.constant 0 : index
    %2 = vector.load %arg2[%c0_1, %c0_2] : memref<32x128xbf16, #tpu.memory_space<vmem>>, vector<32x128xbf16>
    %cst = arith.constant dense<0.000000e+00> : vector<512x128xf32>
    %3 = tpu.matmul %1, %2, %cst {dimension_numbers = #tpu.dot_dimension_numbers<[1], [0], [0], [1], [0, 0, 1, 1], [], []>} : vector<512x32xbf16>, vector<32x128xbf16>, vector<512x128xf32> -> vector<512x128xf32>
    %c0_3 = arith.constant 0 : index
    %c0_4 = arith.constant 0 : index
    %4 = vector.load %arg3[%c0_3, %c0_4] : memref<1x128xf32, #tpu.memory_space<vmem>>, vector<1x128xf32>
    %5 = vector.broadcast %4 : vector<1x128xf32> to vector<512x128xf32>
    %6 = arith.addf %3, %5 : vector<512x128xf32>
    %cst_5 = arith.constant 0.000000e+00 : f32
    %7 = vector.broadcast %cst_5 : f32 to vector<512x128xf32>
    %8 = arith.maximumf %6, %7 : vector<512x128xf32>
    %9 = arith.truncf %8 : vector<512x128xf32> to vector<512x128xbf16>
    %c0_6 = arith.constant 0 : index
    %c0_7 = arith.constant 0 : index
    %10 = vector.load %arg4[%c0_6, %c0_7] : memref<128x64xbf16, #tpu.memory_space<vmem>>, vector<128x64xbf16>
    %cst_8 = arith.constant dense<0.000000e+00> : vector<512x64xf32>
    %11 = tpu.matmul %9, %10, %cst_8 {dimension_numbers = #tpu.dot_dimension_numbers<[1], [0], [0], [1], [0, 0, 1, 1], [], []>} : vector<512x128xbf16>, vector<128x64xbf16>, vector<512x64xf32> -> vector<512x64xf32>
    %c0_9 = arith.constant 0 : index
    %c0_10 = arith.constant 0 : index
    %12 = vector.load %arg5[%c0_9, %c0_10] : memref<1x64xf32, #tpu.memory_space<vmem>>, vector<1x64xf32>
    %13 = vector.broadcast %12 : vector<1x64xf32> to vector<512x64xf32>
    %14 = arith.addf %11, %13 : vector<512x64xf32>
    %cst_11 = arith.constant 0.000000e+00 : f32
    %15 = vector.broadcast %cst_11 : f32 to vector<512x64xf32>
    %16 = arith.maximumf %14, %15 : vector<512x64xf32>
    %17 = arith.truncf %16 : vector<512x64xf32> to vector<512x64xbf16>
    %c0_12 = arith.constant 0 : index
    %c0_13 = arith.constant 0 : index
    %18 = vector.load %arg6[%c0_12, %c0_13] : memref<64x8xbf16, #tpu.memory_space<vmem>>, vector<64x8xbf16>
    %cst_14 = arith.constant dense<0.000000e+00> : vector<512x8xf32>
    %19 = tpu.matmul %17, %18, %cst_14 {dimension_numbers = #tpu.dot_dimension_numbers<[1], [0], [0], [1], [0, 0, 1, 1], [], []>} : vector<512x64xbf16>, vector<64x8xbf16>, vector<512x8xf32> -> vector<512x8xf32>
    %c0_15 = arith.constant 0 : index
    %c0_16 = arith.constant 0 : index
    %20 = vector.load %arg7[%c0_15, %c0_16] : memref<1x8xf32, #tpu.memory_space<vmem>>, vector<1x8xf32>
    %21 = vector.broadcast %20 : vector<1x8xf32> to vector<512x8xf32>
    %22 = arith.addf %19, %21 : vector<512x8xf32>
    %23 = arith.negf %22 : vector<512x8xf32>
    %24 = math.exp %23 : vector<512x8xf32>
    %cst_17 = arith.constant 1.000000e+00 : f32
    %25 = vector.broadcast %cst_17 : f32 to vector<512x8xf32>
    %26 = arith.addf %25, %24 : vector<512x8xf32>
    %27 = arith.divf %25, %26 : vector<512x8xf32>
    %28 = arith.truncf %27 : vector<512x8xf32> to vector<512x8xbf16>
    %c0_18 = arith.constant 0 : index
    %c0_19 = arith.constant 0 : index
    %29 = vector.load %arg8[%c0_18, %c0_19] : memref<512x8xbf16, #tpu.memory_space<vmem>>, vector<512x8xbf16>
    tpu.vector_store %arg8[%c0_18, %c0_19], %28 {strides = array<i32>} : memref<512x8xbf16, #tpu.memory_space<vmem>>, vector<512x8xbf16>,
    return
  }
  func.func @transform_0(%arg0: i32) -> (i32, i32) {
    %c0_i32 = arith.constant 0 : i32
    %c0_i32_0 = arith.constant 0 : i32
    return %arg0, %c0_i32 : i32, i32
  }
  func.func @transform_1(%arg0: i32) -> (i32, i32) {
    %c0_i32 = arith.constant 0 : i32
    %c0_i32_0 = arith.constant 0 : i32
    %c0_i32_1 = arith.constant 0 : i32
    return %c0_i32, %c0_i32_0 : i32, i32
  }
  func.func @transform_2(%arg0: i32) -> (i32, i32) {
    %c0_i32 = arith.constant 0 : i32
    %c0_i32_0 = arith.constant 0 : i32
    %c0_i32_1 = arith.constant 0 : i32
    return %c0_i32, %c0_i32_0 : i32, i32
  }
  func.func @transform_3(%arg0: i32) -> (i32, i32) {
    %c0_i32 = arith.constant 0 : i32
    %c0_i32_0 = arith.constant 0 : i32
    %c0_i32_1 = arith.constant 0 : i32
    return %c0_i32, %c0_i32_0 : i32, i32
  }
  func.func @transform_4(%arg0: i32) -> (i32, i32) {
    %c0_i32 = arith.constant 0 : i32
    %c0_i32_0 = arith.constant 0 : i32
    %c0_i32_1 = arith.constant 0 : i32
    return %c0_i32, %c0_i32_0 : i32, i32
  }
  func.func @transform_5(%arg0: i32) -> (i32, i32) {
    %c0_i32 = arith.constant 0 : i32
    %c0_i32_0 = arith.constant 0 : i32
    %c0_i32_1 = arith.constant 0 : i32
    return %c0_i32, %c0_i32_0 : i32, i32
  }
  func.func @transform_6(%arg0: i32) -> (i32, i32) {
    %c0_i32 = arith.constant 0 : i32
    %c0_i32_0 = arith.constant 0 : i32
    %c0_i32_1 = arith.constant 0 : i32
    return %c0_i32, %c0_i32_0 : i32, i32
  }
  func.func @transform_7(%arg0: i32) -> (i32, i32) {
    %c0_i32 = arith.constant 0 : i32
    %c0_i32_0 = arith.constant 0 : i32
    return %arg0, %c0_i32 : i32, i32
  }
}

</mosaic_0001>

<llo_original>
// kernel: tpu_custom_call.1
$region0: #{tpu_custom_call.1}
  #allocation0 [shape = 'u32[]', space=smem, size = 0x4, offset = 0x4, fixed_abs, tag = 'smem constant byte address 0x4 - core index']
  #allocation1 [shape = 'u32[144,128]{1,0:T(1,128)}', space=vmem, size = 0x12000, scoped, tag = 'internal scratch']
  %s0 = inlined_call_operand.vmem [shape: f32[512,32], index: 0, kind: input, shape index: {}]
  %s1 = inlined_call_operand.vmem [shape: bf16[32,128], index: 1, kind: input, shape index: {}]
  %s2 = inlined_call_operand.vmem [shape: f32[1,128], index: 2, kind: input, shape index: {}]
  %s3 = inlined_call_operand.vmem [shape: bf16[128,64], index: 3, kind: input, shape index: {}]
  %s4 = inlined_call_operand.vmem [shape: f32[1,64], index: 4, kind: input, shape index: {}]
  %s5 = inlined_call_operand.vmem [shape: bf16[64,8], index: 5, kind: input, shape index: {}]
  %s6 = inlined_call_operand.vmem [shape: f32[1,8], index: 6, kind: input, shape index: {}]
  %s7 = inlined_call_operand.vmem [shape: bf16[512,8], index: 7, kind: output, shape index: {}]
  %s8 = sld [smem:[#allocation0]]
  $region38: #{tpu_custom_call.1} parent=0
    _
  %s10 = ssub.s32 1, %s8
  %s11 = scalar_select 0, %s10, %s8
  // Predicated region
  $region2: #{tpu_custom_call.1} parent=0 // pred_check
    _
  $region3: #{tpu_custom_call.1} parent=0 // pred_check_branch
    %13 = sbr.rel (0) target = $region5
  $region4: #{tpu_custom_call.1} parent=0 // pred_region
    _
  $region5: #{tpu_custom_call.1} parent=0 // pred_fallthru
    _
  // Predicated region
  $region6: #{tpu_custom_call.1} parent=0 // pred_check
    _
  $region7: #{tpu_custom_call.1} parent=0 // pred_check_branch
    %15 = sbr.rel (0) target = $region9
  $region8: #{tpu_custom_call.1} parent=0 // pred_region
    _
  $region9: #{tpu_custom_call.1} parent=0 // pred_fallthru
    _
  // Predicated region
  $region10: #{tpu_custom_call.1} parent=0 // pred_check
    _
  $region11: #{tpu_custom_call.1} parent=0 // pred_check_branch
    %17 = sbr.rel (0) target = $region13
  $region12: #{tpu_custom_call.1} parent=0 // pred_region
    _
  $region13: #{tpu_custom_call.1} parent=0 // pred_fallthru
    _
  // Predicated region
  $region14: #{tpu_custom_call.1} parent=0 // pred_check
    _
  $region15: #{tpu_custom_call.1} parent=0 // pred_check_branch
    %19 = sbr.rel (0) target = $region17
  $region16: #{tpu_custom_call.1} parent=0 // pred_region
    _
  $region17: #{tpu_custom_call.1} parent=0 // pred_fallthru
    _
  // Predicated region
  $region18: #{tpu_custom_call.1} parent=0 // pred_check
    _
  $region19: #{tpu_custom_call.1} parent=0 // pred_check_branch
    %21 = sbr.rel (0) target = $region21
  $region20: #{tpu_custom_call.1} parent=0 // pred_region
    _
  $region21: #{tpu_custom_call.1} parent=0 // pred_fallthru
    _
  // Predicated region
  $region22: #{tpu_custom_call.1} parent=0 // pred_check
    _
  $region23: #{tpu_custom_call.1} parent=0 // pred_check_branch
    %23 = sbr.rel (0) target = $region25
  $region24: #{tpu_custom_call.1} parent=0 // pred_region
    _
  $region25: #{tpu_custom_call.1} parent=0 // pred_fallthru
    _
  // Predicated region
  $region26: #{tpu_custom_call.1} parent=0 // pred_check
    _
  $region27: #{tpu_custom_call.1} parent=0 // pred_check_branch
    %25 = sbr.rel (0) target = $region29
  $region28: #{tpu_custom_call.1} parent=0 // pred_region
    _
  $region29: #{tpu_custom_call.1} parent=0 // pred_fallthru
    _
  %v27 = vld [vmem:[%s0] sm:$0xff]
  %v28 = vld [vmem:[%s0 + $0x8] sm:$0xff]
  %v29 = vld [vmem:[%s0 + $0x10] sm:$0xff]
  %v30 = vld [vmem:[%s0 + $0x18] sm:$0xff]
  %v31 = vld [vmem:[%s0 + $0x20] sm:$0xff]
  %v32 = vld [vmem:[%s0 + $0x28] sm:$0xff]
  %v33 = vld [vmem:[%s0 + $0x30] sm:$0xff]
  %v34 = vld [vmem:[%s0 + $0x38] sm:$0xff]
  %v35 = vld [vmem:[%s0 + $0x40] sm:$0xff]
  %v36 = vld [vmem:[%s0 + $0x48] sm:$0xff]
  %v37 = vld [vmem:[%s0 + $0x50] sm:$0xff]
  %v38 = vld [vmem:[%s0 + $0x58] sm:$0xff]
  %v39 = vld [vmem:[%s0 + $0x60] sm:$0xff]
  %v40 = vld [vmem:[%s0 + $0x68] sm:$0xff]
  %v41 = vld [vmem:[%s0 + $0x70] sm:$0xff]
  %v42 = vld [vmem:[%s0 + $0x78] sm:$0xff]
  %v43 = vld [vmem:[%s0 + $0x80] sm:$0xff]
  %v44 = vld [vmem:[%s0 + $0x88] sm:$0xff]
  %v45 = vld [vmem:[%s0 + $0x90] sm:$0xff]
  %v46 = vld [vmem:[%s0 + $0x98] sm:$0xff]
  %v47 = vld [vmem:[%s0 + $0xa0] sm:$0xff]
  %v48 = vld [vmem:[%s0 + $0xa8] sm:$0xff]
  %v49 = vld [vmem:[%s0 + $0xb0] sm:$0xff]
  %v50 = vld [vmem:[%s0 + $0xb8] sm:$0xff]
  %v51 = vld [vmem:[%s0 + $0xc0] sm:$0xff]
  %v52 = vld [vmem:[%s0 + $0xc8] sm:$0xff]
  %v53 = vld [vmem:[%s0 + $0xd0] sm:$0xff]
  %v54 = vld [vmem:[%s0 + $0xd8] sm:$0xff]
  %v55 = vld [vmem:[%s0 + $0xe0] sm:$0xff]
  %v56 = vld [vmem:[%s0 + $0xe8] sm:$0xff]
  %v57 = vld [vmem:[%s0 + $0xf0] sm:$0xff]
  %v58 = vld [vmem:[%s0 + $0xf8] sm:$0xff]
  %v59 = vld [vmem:[%s0 + $0x100] sm:$0xff]
  %v60 = vld [vmem:[%s0 + $0x108] sm:$0xff]
  %v61 = vld [vmem:[%s0 + $0x110] sm:$0xff]
  %v62 = vld [vmem:[%s0 + $0x118] sm:$0xff]
  %v63 = vld [vmem:[%s0 + $0x120] sm:$0xff]
  %v64 = vld [vmem:[%s0 + $0x128] sm:$0xff]
  %v65 = vld [vmem:[%s0 + $0x130] sm:$0xff]
  %v66 = vld [vmem:[%s0 + $0x138] sm:$0xff]
  %v67 = vld [vmem:[%s0 + $0x140] sm:$0xff]
  %v68 = vld [vmem:[%s0 + $0x148] sm:$0xff]
  %v69 = vld [vmem:[%s0 + $0x150] sm:$0xff]
  %v70 = vld [vmem:[%s0 + $0x158] sm:$0xff]
  %v71 = vld [vmem:[%s0 + $0x160] sm:$0xff]
  %v72 = vld [vmem:[%s0 + $0x168] sm:$0xff]
  %v73 = vld [vmem:[%s0 + $0x170] sm:$0xff]
  %v74 = vld [vmem:[%s0 + $0x178] sm:$0xff]
  %v75 = vld [vmem:[%s0 + $0x180] sm:$0xff]
  %v76 = vld [vmem:[%s0 + $0x188] sm:$0xff]
  %v77 = vld [vmem:[%s0 + $0x190] sm:$0xff]
  %v78 = vld [vmem:[%s0 + $0x198] sm:$0xff]
  %v79 = vld [vmem:[%s0 + $0x1a0] sm:$0xff]
  %v80 = vld [vmem:[%s0 + $0x1a8] sm:$0xff]
  %v81 = vld [vmem:[%s0 + $0x1b0] sm:$0xff]
  %v82 = vld [vmem:[%s0 + $0x1b8] sm:$0xff]
  %v83 = vld [vmem:[%s0 + $0x1c0] sm:$0xff]
  %v84 = vld [vmem:[%s0 + $0x1c8] sm:$0xff]
  %v85 = vld [vmem:[%s0 + $0x1d0] sm:$0xff]
  %v86 = vld [vmem:[%s0 + $0x1d8] sm:$0xff]
  %v87 = vld [vmem:[%s0 + $0x1e0] sm:$0xff]
  %v88 = vld [vmem:[%s0 + $0x1e8] sm:$0xff]
  %v89 = vld [vmem:[%s0 + $0x1f0] sm:$0xff]
  %v90 = vld [vmem:[%s0 + $0x1f8] sm:$0xff]
  %v91 = vpack.c.bf16 %v28, %v27
  %v92 = vpack.c.bf16 %v30, %v29
  %v93 = vpack.c.bf16 %v32, %v31
  %v94 = vpack.c.bf16 %v34, %v33
  %v95 = vpack.c.bf16 %v36, %v35
  %v96 = vpack.c.bf16 %v38, %v37
  %v97 = vpack.c.bf16 %v40, %v39
  %v98 = vpack.c.bf16 %v42, %v41
  %v99 = vpack.c.bf16 %v44, %v43
  %v100 = vpack.c.bf16 %v46, %v45
  %v101 = vpack.c.bf16 %v48, %v47
  %v102 = vpack.c.bf16 %v50, %v49
  %v103 = vpack.c.bf16 %v52, %v51
  %v104 = vpack.c.bf16 %v54, %v53
  %v105 = vpack.c.bf16 %v56, %v55
  %v106 = vpack.c.bf16 %v58, %v57
  %v107 = vpack.c.bf16 %v60, %v59
  %v108 = vpack.c.bf16 %v62, %v61
  %v109 = vpack.c.bf16 %v64, %v63
  %v110 = vpack.c.bf16 %v66, %v65
  %v111 = vpack.c.bf16 %v68, %v67
  %v112 = vpack.c.bf16 %v70, %v69
  %v113 = vpack.c.bf16 %v72, %v71
  %v114 = vpack.c.bf16 %v74, %v73
  %v115 = vpack.c.bf16 %v76, %v75
  %v116 = vpack.c.bf16 %v78, %v77
  %v117 = vpack.c.bf16 %v80, %v79
  %v118 = vpack.c.bf16 %v82, %v81
  %v119 = vpack.c.bf16 %v84, %v83
  %v120 = vpack.c.bf16 %v86, %v85
  %v121 = vpack.c.bf16 %v88, %v87
  %v122 = vpack.c.bf16 %v90, %v89
  %v123 = vld [vmem:[%s1] sm:$0xf]
  %v124 = vld [vmem:[%s1 + $0x4] sm:$0xf]
  %v125 = vld [vmem:[%s1 + $0x8] sm:$0xf]
  %v126 = vld [vmem:[%s1 + $0xc] sm:$0xf]
  %v127 = vld [vmem:[%s2] sm:$0x1]
  %v129 = vlaneseq
  %v130 = vshrl.u32 %v129, 7
  %v131 = vsub.s32 0, %v130
  %v132 = vrot.slane %v127, %v131
  %v138 = vunpack.c.l.b16 %v123
  %v139 = vunpack.c.l.b16 %v124
  %v140 = vunpack.c.l.b16 %v125
  %v141 = vunpack.c.l.b16 %v126
  %v142 = vpack.c.b16 %v139, %v138
  %v143 = vpack.c.b16 %v141, %v140
  %vm146 = vcmask 261120
  %v148 = vsel %vm146, %v91, 0
  %v151 = vsel %vm146, %v92, 0
  %v154 = vsel %vm146, %v93, 0
  %v157 = vsel %vm146, %v94, 0
  %v160 = vsel %vm146, %v95, 0
  %v163 = vsel %vm146, %v96, 0
  %v166 = vsel %vm146, %v97, 0
  %v169 = vsel %vm146, %v98, 0
  %v172 = vsel %vm146, %v99, 0
  %v175 = vsel %vm146, %v100, 0
  %v178 = vsel %vm146, %v101, 0
  %v181 = vsel %vm146, %v102, 0
  %v184 = vsel %vm146, %v103, 0
  %v187 = vsel %vm146, %v104, 0
  %v190 = vsel %vm146, %v105, 0
  %v193 = vsel %vm146, %v106, 0
  %v196 = vsel %vm146, %v107, 0
  %v199 = vsel %vm146, %v108, 0
  %v202 = vsel %vm146, %v109, 0
  %v205 = vsel %vm146, %v110, 0
  %v208 = vsel %vm146, %v111, 0
  %v211 = vsel %vm146, %v112, 0
  %v214 = vsel %vm146, %v113, 0
  %v217 = vsel %vm146, %v114, 0
  %v220 = vsel %vm146, %v115, 0
  %v223 = vsel %vm146, %v116, 0
  %v226 = vsel %vm146, %v117, 0
  %v229 = vsel %vm146, %v118, 0
  %v232 = vsel %vm146, %v119, 0
  %v235 = vsel %vm146, %v120, 0
  %v238 = vsel %vm146, %v121, 0
  %v241 = vsel %vm146, %v122, 0
  %243 = vmatprep.subr.bf16.mxu0 0
  %244 = vmatpush1.bf16.msra.mxu0 %v142
  %245 = vmatprep.subr.bf16.mxu0 0
  %246 = vmatpush1.bf16.msra.mxu0 %v143
  %247 = vmatprep.subr.bf16.mxu0 0
  %248 = vmatpush1.bf16.msra.mxu0 0
  %249 = vmatprep.subr.bf16.mxu0 0
  %250 = vmatpush1.bf16.msra.mxu0 0
  %251 = vmatprep.subr.bf16.mxu0 0
  %252 = vmatpush1.bf16.msra.mxu0 0
  %253 = vmatprep.subr.bf16.mxu0 0
  %254 = vmatpush1.bf16.msra.mxu0 0
  %255 = vmatprep.subr.bf16.mxu0 0
  %256 = vmatpush1.bf16.msra.mxu0 0
  %257 = vmatprep.subr.bf16.mxu0 0
  %258 = vmatpush1.bf16.msra.mxu0 0
  %259 = vmatprep.subr.bf16.mxu0 0
  %260 = vmatpush1.bf16.msra.mxu0 0
  %261 = vmatprep.subr.bf16.mxu0 0
  %262 = vmatpush1.bf16.msra.mxu0 0
  %263 = vmatprep.subr.bf16.mxu0 0
  %264 = vmatpush1.bf16.msra.mxu0 0
  %265 = vmatprep.subr.bf16.mxu0 0
  %266 = vmatpush1.bf16.msra.mxu0 0
  %267 = vmatprep.subr.bf16.mxu0 0
  %268 = vmatpush1.bf16.msra.mxu0 0
  %269 = vmatprep.subr.bf16.mxu0 0
  %270 = vmatpush1.bf16.msra.mxu0 0
  %271 = vmatprep.subr.bf16.mxu0 0
  %272 = vmatpush1.bf16.msra.mxu0 0
  %273 = vmatprep.subr.bf16.mxu0 0
  %274 = vmatpush1.bf16.msra.mxu0 0
  %275 = vmatprep.mubr.bf16.mxu0 0
  %276 = vmatmul.mubr.bf16.gmra.mrb[0].mxu0 %v148
  %v277 = vpop.f32.mrb[0].mxu0
  %v278 = vadd.f32 %v132, %v277
  %v279 = vpop.f32.mrb[0].mxu0
  %v280 = vpop.f32.mrb[0].mxu0
  %v281 = vadd.f32 %v132, %v280
  %v282 = vpop.f32.mrb[0].mxu0
  %283 = vmatprep.mubr.bf16.mxu0 0
  %284 = vmatmul.mubr.bf16.gmra.mrb[0].mxu0 %v151
  %v285 = vpop.f32.mrb[0].mxu0
  %v286 = vadd.f32 %v132, %v285
  %v287 = vpop.f32.mrb[0].mxu0
  %v288 = vpop.f32.mrb[0].mxu0
  %v289 = vadd.f32 %v132, %v288
  %v290 = vpop.f32.mrb[0].mxu0
  %291 = vmatprep.mubr.bf16.mxu0 0
  %292 = vmatmul.mubr.bf16.gmra.mrb[0].mxu0 %v154
  %v293 = vpop.f32.mrb[0].mxu0
  %v294 = vadd.f32 %v132, %v293
  %v295 = vpop.f32.mrb[0].mxu0
  %v296 = vpop.f32.mrb[0].mxu0
  %v297 = vadd.f32 %v132, %v296
  %v298 = vpop.f32.mrb[0].mxu0
  %299 = vmatprep.mubr.bf16.mxu0 0
  %300 = vmatmul.mubr.bf16.gmra.mrb[0].mxu0 %v157
  %v301 = vpop.f32.mrb[0].mxu0
  %v302 = vadd.f32 %v132, %v301
  %v303 = vpop.f32.mrb[0].mxu0
  %v304 = vpop.f32.mrb[0].mxu0
  %v305 = vadd.f32 %v132, %v304
  %v306 = vpop.f32.mrb[0].mxu0
  %307 = vmatprep.mubr.bf16.mxu0 0
  %308 = vmatmul.mubr.bf16.gmra.mrb[0].mxu0 %v160
  %v309 = vpop.f32.mrb[0].mxu0
  %v310 = vadd.f32 %v132, %v309
  %v311 = vpop.f32.mrb[0].mxu0
  %v312 = vpop.f32.mrb[0].mxu0
  %v313 = vadd.f32 %v132, %v312
  %v314 = vpop.f32.mrb[0].mxu0
  %315 = vmatprep.mubr.bf16.mxu0 0
  %316 = vmatmul.mubr.bf16.gmra.mrb[0].mxu0 %v163
  %v317 = vpop.f32.mrb[0].mxu0
  %v318 = vadd.f32 %v132, %v317
  %v319 = vpop.f32.mrb[0].mxu0
  %v320 = vpop.f32.mrb[0].mxu0
  %v321 = vadd.f32 %v132, %v320
  %v322 = vpop.f32.mrb[0].mxu0
  %323 = vmatprep.mubr.bf16.mxu0 0
  %324 = vmatmul.mubr.bf16.gmra.mrb[0].mxu0 %v166
  %v325 = vpop.f32.mrb[0].mxu0
  %v326 = vadd.f32 %v132, %v325
  %v327 = vpop.f32.mrb[0].mxu0
  %v328 = vpop.f32.mrb[0].mxu0
  %v329 = vadd.f32 %v132, %v328
  %v330 = vpop.f32.mrb[0].mxu0
  %331 = vmatprep.mubr.bf16.mxu0 0
  %332 = vmatmul.mubr.bf16.gmra.mrb[0].mxu0 %v169
  %v333 = vpop.f32.mrb[0].mxu0
  %v334 = vadd.f32 %v132, %v333
  %v335 = vpop.f32.mrb[0].mxu0
  %v336 = vpop.f32.mrb[0].mxu0
  %v337 = vadd.f32 %v132, %v336
  %v338 = vpop.f32.mrb[0].mxu0
  %339 = vmatprep.mubr.bf16.mxu0 0
  %340 = vmatmul.mubr.bf16.gmra.mrb[0].mxu0 %v172
  %v341 = vpop.f32.mrb[0].mxu0
  %v342 = vadd.f32 %v132, %v341
  %v343 = vpop.f32.mrb[0].mxu0
  %v344 = vpop.f32.mrb[0].mxu0
  %v345 = vadd.f32 %v132, %v344
  %v346 = vpop.f32.mrb[0].mxu0
  %347 = vmatprep.mubr.bf16.mxu0 0
  %348 = vmatmul.mubr.bf16.gmra.mrb[0].mxu0 %v175
  %v349 = vpop.f32.mrb[0].mxu0
  %v350 = vadd.f32 %v132, %v349
  %v351 = vpop.f32.mrb[0].mxu0
  %v352 = vpop.f32.mrb[0].mxu0
  %v353 = vadd.f32 %v132, %v352
  %v354 = vpop.f32.mrb[0].mxu0
  %355 = vmatprep.mubr.bf16.mxu0 0
  %356 = vmatmul.mubr.bf16.gmra.mrb[0].mxu0 %v178
  %v357 = vpop.f32.mrb[0].mxu0
  %v358 = vadd.f32 %v132, %v357
  %v359 = vpop.f32.mrb[0].mxu0
  %v360 = vpop.f32.mrb[0].mxu0
  %v361 = vadd.f32 %v132, %v360
  %v362 = vpop.f32.mrb[0].mxu0
  %363 = vmatprep.mubr.bf16.mxu0 0
  %364 = vmatmul.mubr.bf16.gmra.mrb[0].mxu0 %v181
  %v365 = vpop.f32.mrb[0].mxu0
  %v366 = vadd.f32 %v132, %v365
  %v367 = vpop.f32.mrb[0].mxu0
  %v368 = vpop.f32.mrb[0].mxu0
  %v369 = vadd.f32 %v132, %v368
  %v370 = vpop.f32.mrb[0].mxu0
  %371 = vmatprep.mubr.bf16.mxu0 0
  %372 = vmatmul.mubr.bf16.gmra.mrb[0].mxu0 %v184
  %v373 = vpop.f32.mrb[0].mxu0
  %v374 = vadd.f32 %v132, %v373
  %v375 = vpop.f32.mrb[0].mxu0
  %v376 = vpop.f32.mrb[0].mxu0
  %v377 = vadd.f32 %v132, %v376
  %v378 = vpop.f32.mrb[0].mxu0
  %379 = vmatprep.mubr.bf16.mxu0 0
  %380 = vmatmul.mubr.bf16.gmra.mrb[0].mxu0 %v187
  %v381 = vpop.f32.mrb[0].mxu0
  %v382 = vadd.f32 %v132, %v381
  %v383 = vpop.f32.mrb[0].mxu0
  %v384 = vpop.f32.mrb[0].mxu0
  %v385 = vadd.f32 %v132, %v384
  %v386 = vpop.f32.mrb[0].mxu0
  %387 = vmatprep.mubr.bf16.mxu0 0
  %388 = vmatmul.mubr.bf16.gmra.mrb[0].mxu0 %v190
  %v389 = vpop.f32.mrb[0].mxu0
  %v390 = vadd.f32 %v132, %v389
  %v391 = vpop.f32.mrb[0].mxu0
  %v392 = vpop.f32.mrb[0].mxu0
  %v393 = vadd.f32 %v132, %v392
  %v394 = vpop.f32.mrb[0].mxu0
  %395 = vmatprep.mubr.bf16.mxu0 0
  %396 = vmatmul.mubr.bf16.gmra.mrb[0].mxu0 %v193
  %v397 = vpop.f32.mrb[0].mxu0
  %v398 = vadd.f32 %v132, %v397
  %v399 = vpop.f32.mrb[0].mxu0
  %v400 = vpop.f32.mrb[0].mxu0
  %v401 = vadd.f32 %v132, %v400
  %v402 = vpop.f32.mrb[0].mxu0
  %403 = vmatprep.mubr.bf16.mxu0 0
  %404 = vmatmul.mubr.bf16.gmra.mrb[0].mxu0 %v196
  %v405 = vpop.f32.mrb[0].mxu0
  %v406 = vadd.f32 %v132, %v405
  %v407 = vpop.f32.mrb[0].mxu0
  %v408 = vpop.f32.mrb[0].mxu0
  %v409 = vadd.f32 %v132, %v408
  %v410 = vpop.f32.mrb[0].mxu0
  %411 = vmatprep.mubr.bf16.mxu0 0
  %412 = vmatmul.mubr.bf16.gmra.mrb[0].mxu0 %v199
  %v413 = vpop.f32.mrb[0].mxu0
  %v414 = vadd.f32 %v132, %v413
  %v415 = vpop.f32.mrb[0].mxu0
  %v416 = vpop.f32.mrb[0].mxu0
  %v417 = vadd.f32 %v132, %v416
  %v418 = vpop.f32.mrb[0].mxu0
  %419 = vmatprep.mubr.bf16.mxu0 0
  %420 = vmatmul.mubr.bf16.gmra.mrb[0].mxu0 %v202
  %v421 = vpop.f32.mrb[0].mxu0
  %v422 = vadd.f32 %v132, %v421
  %v423 = vpop.f32.mrb[0].mxu0
  %v424 = vpop.f32.mrb[0].mxu0
  %v425 = vadd.f32 %v132, %v424
  %v426 = vpop.f32.mrb[0].mxu0
  %427 = vmatprep.mubr.bf16.mxu0 0
  %428 = vmatmul.mubr.bf16.gmra.mrb[0].mxu0 %v205
  %v429 = vpop.f32.mrb[0].mxu0
  %v430 = vadd.f32 %v132, %v429
  %v431 = vpop.f32.mrb[0].mxu0
  %v432 = vpop.f32.mrb[0].mxu0
  %v433 = vadd.f32 %v132, %v432
  %v434 = vpop.f32.mrb[0].mxu0
  %435 = vmatprep.mubr.bf16.mxu0 0
  %436 = vmatmul.mubr.bf16.gmra.mrb[0].mxu0 %v208
  %v437 = vpop.f32.mrb[0].mxu0
  %v438 = vadd.f32 %v132, %v437
  %v439 = vpop.f32.mrb[0].mxu0
  %v440 = vpop.f32.mrb[0].mxu0
  %v441 = vadd.f32 %v132, %v440
  %v442 = vpop.f32.mrb[0].mxu0
  %443 = vmatprep.mubr.bf16.mxu0 0
  %444 = vmatmul.mubr.bf16.gmra.mrb[0].mxu0 %v211
  %v445 = vpop.f32.mrb[0].mxu0
  %v446 = vadd.f32 %v132, %v445
  %v447 = vpop.f32.mrb[0].mxu0
  %v448 = vpop.f32.mrb[0].mxu0
  %v449 = vadd.f32 %v132, %v448
  %v450 = vpop.f32.mrb[0].mxu0
  %451 = vmatprep.mubr.bf16.mxu0 0
  %452 = vmatmul.mubr.bf16.gmra.mrb[0].mxu0 %v214
  %v453 = vpop.f32.mrb[0].mxu0
  %v454 = vadd.f32 %v132, %v453
  %v455 = vpop.f32.mrb[0].mxu0
  %v456 = vpop.f32.mrb[0].mxu0
  %v457 = vadd.f32 %v132, %v456
  %v458 = vpop.f32.mrb[0].mxu0
  %459 = vmatprep.mubr.bf16.mxu0 0
  %460 = vmatmul.mubr.bf16.gmra.mrb[0].mxu0 %v217
  %v461 = vpop.f32.mrb[0].mxu0
  %v462 = vadd.f32 %v132, %v461
  %v463 = vpop.f32.mrb[0].mxu0
  %v464 = vpop.f32.mrb[0].mxu0
  %v465 = vadd.f32 %v132, %v464
  %v466 = vpop.f32.mrb[0].mxu0
  %467 = vmatprep.mubr.bf16.mxu0 0
  %468 = vmatmul.mubr.bf16.gmra.mrb[0].mxu0 %v220
  %v469 = vpop.f32.mrb[0].mxu0
  %v470 = vadd.f32 %v132, %v469
  %v471 = vpop.f32.mrb[0].mxu0
  %v472 = vpop.f32.mrb[0].mxu0
  %v473 = vadd.f32 %v132, %v472
  %v474 = vpop.f32.mrb[0].mxu0
  %475 = vmatprep.mubr.bf16.mxu0 0
  %476 = vmatmul.mubr.bf16.gmra.mrb[0].mxu0 %v223
  %v477 = vpop.f32.mrb[0].mxu0
  %v478 = vadd.f32 %v132, %v477
  %v479 = vpop.f32.mrb[0].mxu0
  %v480 = vpop.f32.mrb[0].mxu0
  %v481 = vadd.f32 %v132, %v480
  %v482 = vpop.f32.mrb[0].mxu0
  %483 = vmatprep.mubr.bf16.mxu0 0
  %484 = vmatmul.mubr.bf16.gmra.mrb[0].mxu0 %v226
  %v485 = vpop.f32.mrb[0].mxu0
  %v486 = vadd.f32 %v132, %v485
  %v487 = vpop.f32.mrb[0].mxu0
  %v488 = vpop.f32.mrb[0].mxu0
  %v489 = vadd.f32 %v132, %v488
  %v490 = vpop.f32.mrb[0].mxu0
  %491 = vmatprep.mubr.bf16.mxu0 0
  %492 = vmatmul.mubr.bf16.gmra.mrb[0].mxu0 %v229
  %v493 = vpop.f32.mrb[0].mxu0
  %v494 = vadd.f32 %v132, %v493
  %v495 = vpop.f32.mrb[0].mxu0
  %v496 = vpop.f32.mrb[0].mxu0
  %v497 = vadd.f32 %v132, %v496
  %v498 = vpop.f32.mrb[0].mxu0
  %499 = vmatprep.mubr.bf16.mxu0 0
  %500 = vmatmul.mubr.bf16.gmra.mrb[0].mxu0 %v232
  %v501 = vpop.f32.mrb[0].mxu0
  %v502 = vadd.f32 %v132, %v501
  %v503 = vpop.f32.mrb[0].mxu0
  %v504 = vpop.f32.mrb[0].mxu0
  %v505 = vadd.f32 %v132, %v504
  %v506 = vpop.f32.mrb[0].mxu0
  %507 = vmatprep.mubr.bf16.mxu0 0
  %508 = vmatmul.mubr.bf16.gmra.mrb[0].mxu0 %v235
  %v509 = vpop.f32.mrb[0].mxu0
  %v510 = vadd.f32 %v132, %v509
  %v511 = vpop.f32.mrb[0].mxu0
  %v512 = vpop.f32.mrb[0].mxu0
  %v513 = vadd.f32 %v132, %v512
  %v514 = vpop.f32.mrb[0].mxu0
  %515 = vmatprep.mubr.bf16.mxu0 0
  %516 = vmatmul.mubr.bf16.gmra.mrb[0].mxu0 %v238
  %v517 = vpop.f32.mrb[0].mxu0
  %v518 = vadd.f32 %v132, %v517
  %v519 = vpop.f32.mrb[0].mxu0
  %v520 = vpop.f32.mrb[0].mxu0
  %v521 = vadd.f32 %v132, %v520
  %v522 = vpop.f32.mrb[0].mxu0
  %523 = vmatprep.mubr.bf16.mxu0 0
  %524 = vmatmul.mubr.bf16.gmra.mrb[0].mxu0 %v241
  %v525 = vpop.f32.mrb[0].mxu0
  %v526 = vadd.f32 %v132, %v525
  %v527 = vpop.f32.mrb[0].mxu0
  %v528 = vpop.f32.mrb[0].mxu0
  %v529 = vadd.f32 %v132, %v528
  %v530 = vpop.f32.mrb[0].mxu0
  %531 = vdwg.mxu0
  %v532 = vmax.f32 %v278, 0.0
  %v533 = vmax.f32 %v281, 0.0
  %v534 = vmax.f32 %v286, 0.0
  %v535 = vmax.f32 %v289, 0.0
  %v536 = vmax.f32 %v294, 0.0
  %v537 = vmax.f32 %v297, 0.0
  %v538 = vmax.f32 %v302, 0.0
  %v539 = vmax.f32 %v305, 0.0
  %v540 = vmax.f32 %v310, 0.0
  %v541 = vmax.f32 %v313, 0.0
  %v542 = vmax.f32 %v318, 0.0
  %v543 = vmax.f32 %v321, 0.0
  %v544 = vmax.f32 %v326, 0.0
  %v545 = vmax.f32 %v329, 0.0
  %v546 = vmax.f32 %v334, 0.0
  %v547 = vmax.f32 %v337, 0.0
  %v548 = vmax.f32 %v342, 0.0
  %v549 = vmax.f32 %v345, 0.0
  %v550 = vmax.f32 %v350, 0.0
  %v551 = vmax.f32 %v353, 0.0
  %v552 = vmax.f32 %v358, 0.0
  %v553 = vmax.f32 %v361, 0.0
  %v554 = vmax.f32 %v366, 0.0
  %v555 = vmax.f32 %v369, 0.0
  %v556 = vmax.f32 %v374, 0.0
  %v557 = vmax.f32 %v377, 0.0
  %v558 = vmax.f32 %v382, 0.0
  %v559 = vmax.f32 %v385, 0.0
  %v560 = vmax.f32 %v390, 0.0
  %v561 = vmax.f32 %v393, 0.0
  %v562 = vmax.f32 %v398, 0.0
  %v563 = vmax.f32 %v401, 0.0
  %v564 = vmax.f32 %v406, 0.0
  %v565 = vmax.f32 %v409, 0.0
  %v566 = vmax.f32 %v414, 0.0
  %v567 = vmax.f32 %v417, 0.0
  %v568 = vmax.f32 %v422, 0.0
  %v569 = vmax.f32 %v425, 0.0
  %v570 = vmax.f32 %v430, 0.0
  %v571 = vmax.f32 %v433, 0.0
  %v572 = vmax.f32 %v438, 0.0
  %v573 = vmax.f32 %v441, 0.0
  %v574 = vmax.f32 %v446, 0.0
  %v575 = vmax.f32 %v449, 0.0
  %v576 = vmax.f32 %v454, 0.0
  %v577 = vmax.f32 %v457, 0.0
  %v578 = vmax.f32 %v462, 0.0
  %v579 = vmax.f32 %v465, 0.0
  %v580 = vmax.f32 %v470, 0.0
  %v581 = vmax.f32 %v473, 0.0
  %v582 = vmax.f32 %v478, 0.0
  %v583 = vmax.f32 %v481, 0.0
  %v584 = vmax.f32 %v486, 0.0
  %v585 = vmax.f32 %v489, 0.0
  %v586 = vmax.f32 %v494, 0.0
  %v587 = vmax.f32 %v497, 0.0
  %v588 = vmax.f32 %v502, 0.0
  %v589 = vmax.f32 %v505, 0.0
  %v590 = vmax.f32 %v510, 0.0
  %v591 = vmax.f32 %v513, 0.0
  %v592 = vmax.f32 %v518, 0.0
  %v593 = vmax.f32 %v521, 0.0
  %v594 = vmax.f32 %v526, 0.0
  %v595 = vmax.f32 %v529, 0.0
  %v596 = vpack.c.bf16 %v533, %v532
  %v597 = vpack.c.bf16 %v535, %v534
  %v598 = vpack.c.bf16 %v537, %v536
  %v599 = vpack.c.bf16 %v539, %v538
  %v600 = vpack.c.bf16 %v541, %v540
  %v601 = vpack.c.bf16 %v543, %v542
  %v602 = vpack.c.bf16 %v545, %v544
  %v603 = vpack.c.bf16 %v547, %v546
  %v604 = vpack.c.bf16 %v549, %v548
  %v605 = vpack.c.bf16 %v551, %v550
  %v606 = vpack.c.bf16 %v553, %v552
  %v607 = vpack.c.bf16 %v555, %v554
  %v608 = vpack.c.bf16 %v557, %v556
  %v609 = vpack.c.bf16 %v559, %v558
  %v610 = vpack.c.bf16 %v561, %v560
  %v611 = vpack.c.bf16 %v563, %v562
  %v612 = vpack.c.bf16 %v565, %v564
  %v613 = vpack.c.bf16 %v567, %v566
  %v614 = vpack.c.bf16 %v569, %v568
  %v615 = vpack.c.bf16 %v571, %v570
  %v616 = vpack.c.bf16 %v573, %v572
  %v617 = vpack.c.bf16 %v575, %v574
  %v618 = vpack.c.bf16 %v577, %v576
  %v619 = vpack.c.bf16 %v579, %v578
  %v620 = vpack.c.bf16 %v581, %v580
  %v621 = vpack.c.bf16 %v583, %v582
  %v622 = vpack.c.bf16 %v585, %v584
  %v623 = vpack.c.bf16 %v587, %v586
  %v624 = vpack.c.bf16 %v589, %v588
  %v625 = vpack.c.bf16 %v591, %v590
  %v626 = vpack.c.bf16 %v593, %v592
  %v627 = vpack.c.bf16 %v595, %v594
  %v628 = vld [vmem:[%s3] sm:$0xf]
  %v629 = vld [vmem:[%s3 + $0x4] sm:$0xf]
  %v630 = vld [vmem:[%s3 + $0x8] sm:$0xf]
  %v631 = vld [vmem:[%s3 + $0xc] sm:$0xf]
  %v632 = vld [vmem:[%s3 + $0x10] sm:$0xf]
  %v633 = vld [vmem:[%s3 + $0x14] sm:$0xf]
  %v634 = vld [vmem:[%s3 + $0x18] sm:$0xf]
  %v635 = vld [vmem:[%s3 + $0x1c] sm:$0xf]
  %v636 = vld [vmem:[%s3 + $0x20] sm:$0xf]
  %v637 = vld [vmem:[%s3 + $0x24] sm:$0xf]
  %v638 = vld [vmem:[%s3 + $0x28] sm:$0xf]
  %v639 = vld [vmem:[%s3 + $0x2c] sm:$0xf]
  %v640 = vld [vmem:[%s3 + $0x30] sm:$0xf]
  %v641 = vld [vmem:[%s3 + $0x34] sm:$0xf]
  %v642 = vld [vmem:[%s3 + $0x38] sm:$0xf]
  %v643 = vld [vmem:[%s3 + $0x3c] sm:$0xf]
  %v644 = vld [vmem:[%s4] sm:$0x1]
  %v646 = vlaneseq
  %v647 = vshrl.u32 %v646, 7
  %v648 = vsub.s32 0, %v647
  %v649 = vrot.slane %v644, %v648
  %v667 = vunpack.c.l.b16 %v628
  %v668 = vunpack.c.l.b16 %v629
  %v669 = vunpack.c.l.b16 %v630
  %v670 = vunpack.c.l.b16 %v631
  %v671 = vunpack.c.l.b16 %v632
  %v672 = vunpack.c.l.b16 %v633
  %v673 = vunpack.c.l.b16 %v634
  %v674 = vunpack.c.l.b16 %v635
  %v675 = vunpack.c.l.b16 %v636
  %v676 = vunpack.c.l.b16 %v637
  %v677 = vunpack.c.l.b16 %v638
  %v678 = vunpack.c.l.b16 %v639
  %v679 = vunpack.c.l.b16 %v640
  %v680 = vunpack.c.l.b16 %v641
  %v681 = vunpack.c.l.b16 %v642
  %v682 = vunpack.c.l.b16 %v643
  %v683 = vpack.c.b16 %v668, %v667
  %v684 = vpack.c.b16 %v670, %v669
  %v685 = vpack.c.b16 %v672, %v671
  %v686 = vpack.c.b16 %v674, %v673
  %v687 = vpack.c.b16 %v676, %v675
  %v688 = vpack.c.b16 %v678, %v677
  %v689 = vpack.c.b16 %v680, %v679
  %v690 = vpack.c.b16 %v682, %v681
  %699 = vmatprep.subr.bf16.mxu0 0
  %700 = vmatpush1.bf16.msra.mxu0 %v683
  %701 = vmatprep.subr.bf16.mxu0 0
  %702 = vmatpush1.bf16.msra.mxu0 %v684
  %703 = vmatprep.subr.bf16.mxu0 0
  %704 = vmatpush1.bf16.msra.mxu0 %v685
  %705 = vmatprep.subr.bf16.mxu0 0
  %706 = vmatpush1.bf16.msra.mxu0 %v686
  %707 = vmatprep.subr.bf16.mxu0 0
  %708 = vmatpush1.bf16.msra.mxu0 %v687
  %709 = vmatprep.subr.bf16.mxu0 0
  %710 = vmatpush1.bf16.msra.mxu0 %v688
  %711 = vmatprep.subr.bf16.mxu0 0
  %712 = vmatpush1.bf16.msra.mxu0 %v689
  %713 = vmatprep.subr.bf16.mxu0 0
  %714 = vmatpush1.bf16.msra.mxu0 %v690
  %715 = vmatprep.subr.bf16.mxu0 0
  %716 = vmatpush1.bf16.msra.mxu0 0
  %717 = vmatprep.subr.bf16.mxu0 0
  %718 = vmatpush1.bf16.msra.mxu0 0
  %719 = vmatprep.subr.bf16.mxu0 0
  %720 = vmatpush1.bf16.msra.mxu0 0
  %721 = vmatprep.subr.bf16.mxu0 0
  %722 = vmatpush1.bf16.msra.mxu0 0
  %723 = vmatprep.subr.bf16.mxu0 0
  %724 = vmatpush1.bf16.msra.mxu0 0
  %725 = vmatprep.subr.bf16.mxu0 0
  %726 = vmatpush1.bf16.msra.mxu0 0
  %727 = vmatprep.subr.bf16.mxu0 0
  %728 = vmatpush1.bf16.msra.mxu0 0
  %729 = vmatprep.subr.bf16.mxu0 0
  %730 = vmatpush1.bf16.msra.mxu0 0
  %731 = vmatprep.mubr.bf16.mxu0 0
  %732 = vmatmul.mubr.bf16.gmra.mrb[0].mxu0 %v596
  %v733 = vpop.f32.mrb[0].mxu0
  %v734 = vadd.f32 %v649, %v733
  %v735 = vpop.f32.mrb[0].mxu0
  %v736 = vpop.f32.mrb[0].mxu0
  %v737 = vadd.f32 %v649, %v736
  %v738 = vpop.f32.mrb[0].mxu0
  %739 = vmatprep.mubr.bf16.mxu0 0
  %740 = vmatmul.mubr.bf16.gmra.mrb[0].mxu0 %v597
  %v741 = vpop.f32.mrb[0].mxu0
  %v742 = vadd.f32 %v649, %v741
  %v743 = vpop.f32.mrb[0].mxu0
  %v744 = vpop.f32.mrb[0].mxu0
  %v745 = vadd.f32 %v649, %v744
  %v746 = vpop.f32.mrb[0].mxu0
  %747 = vmatprep.mubr.bf16.mxu0 0
  %748 = vmatmul.mubr.bf16.gmra.mrb[0].mxu0 %v598
  %v749 = vpop.f32.mrb[0].mxu0
  %v750 = vadd.f32 %v649, %v749
  %v751 = vpop.f32.mrb[0].mxu0
  %v752 = vpop.f32.mrb[0].mxu0
  %v753 = vadd.f32 %v649, %v752
  %v754 = vpop.f32.mrb[0].mxu0
  %755 = vmatprep.mubr.bf16.mxu0 0
  %756 = vmatmul.mubr.bf16.gmra.mrb[0].mxu0 %v599
  %v757 = vpop.f32.mrb[0].mxu0
  %v758 = vadd.f32 %v649, %v757
  %v759 = vpop.f32.mrb[0].mxu0
  %v760 = vpop.f32.mrb[0].mxu0
  %v761 = vadd.f32 %v649, %v760
  %v762 = vpop.f32.mrb[0].mxu0
  %763 = vmatprep.mubr.bf16.mxu0 0
  %764 = vmatmul.mubr.bf16.gmra.mrb[0].mxu0 %v600
  %v765 = vpop.f32.mrb[0].mxu0
  %v766 = vadd.f32 %v649, %v765
  %v767 = vpop.f32.mrb[0].mxu0
  %v768 = vpop.f32.mrb[0].mxu0
  %v769 = vadd.f32 %v649, %v768
  %v770 = vpop.f32.mrb[0].mxu0
  %771 = vmatprep.mubr.bf16.mxu0 0
  %772 = vmatmul.mubr.bf16.gmra.mrb[0].mxu0 %v601
  %v773 = vpop.f32.mrb[0].mxu0
  %v774 = vadd.f32 %v649, %v773
  %v775 = vpop.f32.mrb[0].mxu0
  %v776 = vpop.f32.mrb[0].mxu0
  %v777 = vadd.f32 %v649, %v776
  %v778 = vpop.f32.mrb[0].mxu0
  %779 = vmatprep.mubr.bf16.mxu0 0
  %780 = vmatmul.mubr.bf16.gmra.mrb[0].mxu0 %v602
  %v781 = vpop.f32.mrb[0].mxu0
  %v782 = vadd.f32 %v649, %v781
  %v783 = vpop.f32.mrb[0].mxu0
  %v784 = vpop.f32.mrb[0].mxu0
  %v785 = vadd.f32 %v649, %v784
  %v786 = vpop.f32.mrb[0].mxu0
  %787 = vmatprep.mubr.bf16.mxu0 0
  %788 = vmatmul.mubr.bf16.gmra.mrb[0].mxu0 %v603
  %v789 = vpop.f32.mrb[0].mxu0
  %v790 = vadd.f32 %v649, %v789
  %v791 = vpop.f32.mrb[0].mxu0
  %v792 = vpop.f32.mrb[0].mxu0
  %v793 = vadd.f32 %v649, %v792
  %v794 = vpop.f32.mrb[0].mxu0
  %795 = vmatprep.mubr.bf16.mxu0 0
  %796 = vmatmul.mubr.bf16.gmra.mrb[0].mxu0 %v604
  %v797 = vpop.f32.mrb[0].mxu0
  %v798 = vadd.f32 %v649, %v797
  %v799 = vpop.f32.mrb[0].mxu0
  %v800 = vpop.f32.mrb[0].mxu0
  %v801 = vadd.f32 %v649, %v800
  %v802 = vpop.f32.mrb[0].mxu0
  %803 = vmatprep.mubr.bf16.mxu0 0
  %804 = vmatmul.mubr.bf16.gmra.mrb[0].mxu0 %v605
  %v805 = vpop.f32.mrb[0].mxu0
  %v806 = vadd.f32 %v649, %v805
  %v807 = vpop.f32.mrb[0].mxu0
  %v808 = vpop.f32.mrb[0].mxu0
  %v809 = vadd.f32 %v649, %v808
  %v810 = vpop.f32.mrb[0].mxu0
  %811 = vmatprep.mubr.bf16.mxu0 0
  %812 = vmatmul.mubr.bf16.gmra.mrb[0].mxu0 %v606
  %v813 = vpop.f32.mrb[0].mxu0
  %v814 = vadd.f32 %v649, %v813
  %v815 = vpop.f32.mrb[0].mxu0
  %v816 = vpop.f32.mrb[0].mxu0
  %v817 = vadd.f32 %v649, %v816
  %v818 = vpop.f32.mrb[0].mxu0
  %819 = vmatprep.mubr.bf16.mxu0 0
  %820 = vmatmul.mubr.bf16.gmra.mrb[0].mxu0 %v607
  %v821 = vpop.f32.mrb[0].mxu0
  %v822 = vadd.f32 %v649, %v821
  %v823 = vpop.f32.mrb[0].mxu0
  %v824 = vpop.f32.mrb[0].mxu0
  %v825 = vadd.f32 %v649, %v824
  %v826 = vpop.f32.mrb[0].mxu0
  %827 = vmatprep.mubr.bf16.mxu0 0
  %828 = vmatmul.mubr.bf16.gmra.mrb[0].mxu0 %v608
  %v829 = vpop.f32.mrb[0].mxu0
  %v830 = vadd.f32 %v649, %v829
  %v831 = vpop.f32.mrb[0].mxu0
  %v832 = vpop.f32.mrb[0].mxu0
  %v833 = vadd.f32 %v649, %v832
  %v834 = vpop.f32.mrb[0].mxu0
  %835 = vmatprep.mubr.bf16.mxu0 0
  %836 = vmatmul.mubr.bf16.gmra.mrb[0].mxu0 %v609
  %v837 = vpop.f32.mrb[0].mxu0
  %v838 = vadd.f32 %v649, %v837
  %v839 = vpop.f32.mrb[0].mxu0
  %v840 = vpop.f32.mrb[0].mxu0
  %v841 = vadd.f32 %v649, %v840
  %v842 = vpop.f32.mrb[0].mxu0
  %843 = vmatprep.mubr.bf16.mxu0 0
  %844 = vmatmul.mubr.bf16.gmra.mrb[0].mxu0 %v610
  %v845 = vpop.f32.mrb[0].mxu0
  %v846 = vadd.f32 %v649, %v845
  %v847 = vpop.f32.mrb[0].mxu0
  %v848 = vpop.f32.mrb[0].mxu0
  %v849 = vadd.f32 %v649, %v848
  %v850 = vpop.f32.mrb[0].mxu0
  %851 = vmatprep.mubr.bf16.mxu0 0
  %852 = vmatmul.mubr.bf16.gmra.mrb[0].mxu0 %v611
  %v853 = vpop.f32.mrb[0].mxu0
  %v854 = vadd.f32 %v649, %v853
  %v855 = vpop.f32.mrb[0].mxu0
  %v856 = vpop.f32.mrb[0].mxu0
  %v857 = vadd.f32 %v649, %v856
  %v858 = vpop.f32.mrb[0].mxu0
  %859 = vmatprep.mubr.bf16.mxu0 0
  %860 = vmatmul.mubr.bf16.gmra.mrb[0].mxu0 %v612
  %v861 = vpop.f32.mrb[0].mxu0
  %v862 = vadd.f32 %v649, %v861
  %v863 = vpop.f32.mrb[0].mxu0
  %v864 = vpop.f32.mrb[0].mxu0
  %v865 = vadd.f32 %v649, %v864
  %v866 = vpop.f32.mrb[0].mxu0
  %867 = vmatprep.mubr.bf16.mxu0 0
  %868 = vmatmul.mubr.bf16.gmra.mrb[0].mxu0 %v613
  %v869 = vpop.f32.mrb[0].mxu0
  %v870 = vadd.f32 %v649, %v869
  %v871 = vpop.f32.mrb[0].mxu0
  %v872 = vpop.f32.mrb[0].mxu0
  %v873 = vadd.f32 %v649, %v872
  %v874 = vpop.f32.mrb[0].mxu0
  %875 = vmatprep.mubr.bf16.mxu0 0
  %876 = vmatmul.mubr.bf16.gmra.mrb[0].mxu0 %v614
  %v877 = vpop.f32.mrb[0].mxu0
  %v878 = vadd.f32 %v649, %v877
  %v879 = vpop.f32.mrb[0].mxu0
  %v880 = vpop.f32.mrb[0].mxu0
  %v881 = vadd.f32 %v649, %v880
  %v882 = vpop.f32.mrb[0].mxu0
  %883 = vmatprep.mubr.bf16.mxu0 0
  %884 = vmatmul.mubr.bf16.gmra.mrb[0].mxu0 %v615
  %v885 = vpop.f32.mrb[0].mxu0
  %v886 = vadd.f32 %v649, %v885
  %v887 = vpop.f32.mrb[0].mxu0
  %v888 = vpop.f32.mrb[0].mxu0
  %v889 = vadd.f32 %v649, %v888
  %v890 = vpop.f32.mrb[0].mxu0
  %891 = vmatprep.mubr.bf16.mxu0 0
  %892 = vmatmul.mubr.bf16.gmra.mrb[0].mxu0 %v616
  %v893 = vpop.f32.mrb[0].mxu0
  %v894 = vadd.f32 %v649, %v893
  %v895 = vpop.f32.mrb[0].mxu0
  %v896 = vpop.f32.mrb[0].mxu0
  %v897 = vadd.f32 %v649, %v896
  %v898 = vpop.f32.mrb[0].mxu0
  %899 = vmatprep.mubr.bf16.mxu0 0
  %900 = vmatmul.mubr.bf16.gmra.mrb[0].mxu0 %v617
  %v901 = vpop.f32.mrb[0].mxu0
  %v902 = vadd.f32 %v649, %v901
  %v903 = vpop.f32.mrb[0].mxu0
  %v904 = vpop.f32.mrb[0].mxu0
  %v905 = vadd.f32 %v649, %v904
  %v906 = vpop.f32.mrb[0].mxu0
  %907 = vmatprep.mubr.bf16.mxu0 0
  %908 = vmatmul.mubr.bf16.gmra.mrb[0].mxu0 %v618
  %v909 = vpop.f32.mrb[0].mxu0
  %v910 = vadd.f32 %v649, %v909
  %v911 = vpop.f32.mrb[0].mxu0
  %v912 = vpop.f32.mrb[0].mxu0
  %v913 = vadd.f32 %v649, %v912
  %v914 = vpop.f32.mrb[0].mxu0
  %915 = vmatprep.mubr.bf16.mxu0 0
  %916 = vmatmul.mubr.bf16.gmra.mrb[0].mxu0 %v619
  %v917 = vpop.f32.mrb[0].mxu0
  %v918 = vadd.f32 %v649, %v917
  %v919 = vpop.f32.mrb[0].mxu0
  %v920 = vpop.f32.mrb[0].mxu0
  %v921 = vadd.f32 %v649, %v920
  %v922 = vpop.f32.mrb[0].mxu0
  %923 = vmatprep.mubr.bf16.mxu0 0
  %924 = vmatmul.mubr.bf16.gmra.mrb[0].mxu0 %v620
  %v925 = vpop.f32.mrb[0].mxu0
  %v926 = vadd.f32 %v649, %v925
  %v927 = vpop.f32.mrb[0].mxu0
  %v928 = vpop.f32.mrb[0].mxu0
  %v929 = vadd.f32 %v649, %v928
  %v930 = vpop.f32.mrb[0].mxu0
  %931 = vmatprep.mubr.bf16.mxu0 0
  %932 = vmatmul.mubr.bf16.gmra.mrb[0].mxu0 %v621
  %v933 = vpop.f32.mrb[0].mxu0
  %v934 = vadd.f32 %v649, %v933
  %v935 = vpop.f32.mrb[0].mxu0
  %v936 = vpop.f32.mrb[0].mxu0
  %v937 = vadd.f32 %v649, %v936
  %v938 = vpop.f32.mrb[0].mxu0
  %939 = vmatprep.mubr.bf16.mxu0 0
  %940 = vmatmul.mubr.bf16.gmra.mrb[0].mxu0 %v622
  %v941 = vpop.f32.mrb[0].mxu0
  %v942 = vadd.f32 %v649, %v941
  %v943 = vpop.f32.mrb[0].mxu0
  %v944 = vpop.f32.mrb[0].mxu0
  %v945 = vadd.f32 %v649, %v944
  %v946 = vpop.f32.mrb[0].mxu0
  %947 = vmatprep.mubr.bf16.mxu0 0
  %948 = vmatmul.mubr.bf16.gmra.mrb[0].mxu0 %v623
  %v949 = vpop.f32.mrb[0].mxu0
  %v950 = vadd.f32 %v649, %v949
  %v951 = vpop.f32.mrb[0].mxu0
  %v952 = vpop.f32.mrb[0].mxu0
  %v953 = vadd.f32 %v649, %v952
  %v954 = vpop.f32.mrb[0].mxu0
  %955 = vmatprep.mubr.bf16.mxu0 0
  %956 = vmatmul.mubr.bf16.gmra.mrb[0].mxu0 %v624
  %v957 = vpop.f32.mrb[0].mxu0
  %v958 = vadd.f32 %v649, %v957
  %v959 = vpop.f32.mrb[0].mxu0
  %v960 = vpop.f32.mrb[0].mxu0
  %v961 = vadd.f32 %v649, %v960
  %v962 = vpop.f32.mrb[0].mxu0
  %963 = vmatprep.mubr.bf16.mxu0 0
  %964 = vmatmul.mubr.bf16.gmra.mrb[0].mxu0 %v625
  %v965 = vpop.f32.mrb[0].mxu0
  %v966 = vadd.f32 %v649, %v965
  %v967 = vpop.f32.mrb[0].mxu0
  %v968 = vpop.f32.mrb[0].mxu0
  %v969 = vadd.f32 %v649, %v968
  %v970 = vpop.f32.mrb[0].mxu0
  %971 = vmatprep.mubr.bf16.mxu0 0
  %972 = vmatmul.mubr.bf16.gmra.mrb[0].mxu0 %v626
  %v973 = vpop.f32.mrb[0].mxu0
  %v974 = vadd.f32 %v649, %v973
  %v975 = vpop.f32.mrb[0].mxu0
  %v976 = vpop.f32.mrb[0].mxu0
  %v977 = vadd.f32 %v649, %v976
  %v978 = vpop.f32.mrb[0].mxu0
  %979 = vmatprep.mubr.bf16.mxu0 0
  %980 = vmatmul.mubr.bf16.gmra.mrb[0].mxu0 %v627
  %v981 = vpop.f32.mrb[0].mxu0
  %v982 = vadd.f32 %v649, %v981
  %v983 = vpop.f32.mrb[0].mxu0
  %v984 = vpop.f32.mrb[0].mxu0
  %v985 = vadd.f32 %v649, %v984
  %v986 = vpop.f32.mrb[0].mxu0
  %987 = vdwg.mxu0
  %v988 = vmax.f32 %v734, 0.0
  %v989 = vmax.f32 %v737, 0.0
  %v990 = vmax.f32 %v742, 0.0
  %v991 = vmax.f32 %v745, 0.0
  %v992 = vmax.f32 %v750, 0.0
  %v993 = vmax.f32 %v753, 0.0
  %v994 = vmax.f32 %v758, 0.0
  %v995 = vmax.f32 %v761, 0.0
  %v996 = vmax.f32 %v766, 0.0
  %v997 = vmax.f32 %v769, 0.0
  %v998 = vmax.f32 %v774, 0.0
  %v999 = vmax.f32 %v777, 0.0
  %v1000 = vmax.f32 %v782, 0.0
  %v1001 = vmax.f32 %v785, 0.0
  %v1002 = vmax.f32 %v790, 0.0
  %v1003 = vmax.f32 %v793, 0.0
  %v1004 = vmax.f32 %v798, 0.0
  %v1005 = vmax.f32 %v801, 0.0
  %v1006 = vmax.f32 %v806, 0.0
  %v1007 = vmax.f32 %v809, 0.0
  %v1008 = vmax.f32 %v814, 0.0
  %v1009 = vmax.f32 %v817, 0.0
  %v1010 = vmax.f32 %v822, 0.0
  %v1011 = vmax.f32 %v825, 0.0
  %v1012 = vmax.f32 %v830, 0.0
  %v1013 = vmax.f32 %v833, 0.0
  %v1014 = vmax.f32 %v838, 0.0
  %v1015 = vmax.f32 %v841, 0.0
  %v1016 = vmax.f32 %v846, 0.0
  %v1017 = vmax.f32 %v849, 0.0
  %v1018 = vmax.f32 %v854, 0.0
  %v1019 = vmax.f32 %v857, 0.0
  %v1020 = vmax.f32 %v862, 0.0
  %v1021 = vmax.f32 %v865, 0.0
  %v1022 = vmax.f32 %v870, 0.0
  %v1023 = vmax.f32 %v873, 0.0
  %v1024 = vmax.f32 %v878, 0.0
  %v1025 = vmax.f32 %v881, 0.0
  %v1026 = vmax.f32 %v886, 0.0
  %v1027 = vmax.f32 %v889, 0.0
  %v1028 = vmax.f32 %v894, 0.0
  %v1029 = vmax.f32 %v897, 0.0
  %v1030 = vmax.f32 %v902, 0.0
  %v1031 = vmax.f32 %v905, 0.0
  %v1032 = vmax.f32 %v910, 0.0
  %v1033 = vmax.f32 %v913, 0.0
  %v1034 = vmax.f32 %v918, 0.0
  %v1035 = vmax.f32 %v921, 0.0
  %v1036 = vmax.f32 %v926, 0.0
  %v1037 = vmax.f32 %v929, 0.0
  %v1038 = vmax.f32 %v934, 0.0
  %v1039 = vmax.f32 %v937, 0.0
  %v1040 = vmax.f32 %v942, 0.0
  %v1041 = vmax.f32 %v945, 0.0
  %v1042 = vmax.f32 %v950, 0.0
  %v1043 = vmax.f32 %v953, 0.0
  %v1044 = vmax.f32 %v958, 0.0
  %v1045 = vmax.f32 %v961, 0.0
  %v1046 = vmax.f32 %v966, 0.0
  %v1047 = vmax.f32 %v969, 0.0
  %v1048 = vmax.f32 %v974, 0.0
  %v1049 = vmax.f32 %v977, 0.0
  %v1050 = vmax.f32 %v982, 0.0
  %v1051 = vmax.f32 %v985, 0.0
  %v1052 = vpack.c.bf16 %v989, %v988
  %v1053 = vpack.c.bf16 %v991, %v990
  %v1054 = vpack.c.bf16 %v993, %v992
  %v1055 = vpack.c.bf16 %v995, %v994
  %v1056 = vpack.c.bf16 %v997, %v996
  %v1057 = vpack.c.bf16 %v999, %v998
  %v1058 = vpack.c.bf16 %v1001, %v1000
  %v1059 = vpack.c.bf16 %v1003, %v1002
  %v1060 = vpack.c.bf16 %v1005, %v1004
  %v1061 = vpack.c.bf16 %v1007, %v1006
  %v1062 = vpack.c.bf16 %v1009, %v1008
  %v1063 = vpack.c.bf16 %v1011, %v1010
  %v1064 = vpack.c.bf16 %v1013, %v1012
  %v1065 = vpack.c.bf16 %v1015, %v1014
  %v1066 = vpack.c.bf16 %v1017, %v1016
  %v1067 = vpack.c.bf16 %v1019, %v1018
  %v1068 = vpack.c.bf16 %v1021, %v1020
  %v1069 = vpack.c.bf16 %v1023, %v1022
  %v1070 = vpack.c.bf16 %v1025, %v1024
  %v1071 = vpack.c.bf16 %v1027, %v1026
  %v1072 = vpack.c.bf16 %v1029, %v1028
  %v1073 = vpack.c.bf16 %v1031, %v1030
  %v1074 = vpack.c.bf16 %v1033, %v1032
  %v1075 = vpack.c.bf16 %v1035, %v1034
  %v1076 = vpack.c.bf16 %v1037, %v1036
  %v1077 = vpack.c.bf16 %v1039, %v1038
  %v1078 = vpack.c.bf16 %v1041, %v1040
  %v1079 = vpack.c.bf16 %v1043, %v1042
  %v1080 = vpack.c.bf16 %v1045, %v1044
  %v1081 = vpack.c.bf16 %v1047, %v1046
  %v1082 = vpack.c.bf16 %v1049, %v1048
  %v1083 = vpack.c.bf16 %v1051, %v1050
  %v1084 = vld [vmem:[%s5] sm:$0xf]
  %v1085 = vld [vmem:[%s5 + $0x4] sm:$0xf]
  %v1086 = vld [vmem:[%s5 + $0x8] sm:$0xf]
  %v1087 = vld [vmem:[%s5 + $0xc] sm:$0xf]
  %v1088 = vld [vmem:[%s5 + $0x10] sm:$0xf]
  %v1089 = vld [vmem:[%s5 + $0x14] sm:$0xf]
  %v1090 = vld [vmem:[%s5 + $0x18] sm:$0xf]
  %v1091 = vld [vmem:[%s5 + $0x1c] sm:$0xf]
  %v1092 = vld [vmem:[%s6] sm:$0x1]
  %v1094 = vlaneseq
  %v1095 = vshrl.u32 %v1094, 7
  %v1096 = vsub.s32 0, %v1095
  %v1097 = vrot.slane %v1092, %v1096
  %v1107 = vunpack.c.l.b16 %v1084
  %v1108 = vunpack.c.l.b16 %v1085
  %v1109 = vunpack.c.l.b16 %v1086
  %v1110 = vunpack.c.l.b16 %v1087
  %v1111 = vunpack.c.l.b16 %v1088
  %v1112 = vunpack.c.l.b16 %v1089
  %v1113 = vunpack.c.l.b16 %v1090
  %v1114 = vunpack.c.l.b16 %v1091
  %v1115 = vpack.c.b16 %v1108, %v1107
  %v1116 = vpack.c.b16 %v1110, %v1109
  %v1117 = vpack.c.b16 %v1112, %v1111
  %v1118 = vpack.c.b16 %v1114, %v1113
  %vm1123 = vcmask 523264
  %v1125 = vsel %vm1123, %v1052, 0
  %v1128 = vsel %vm1123, %v1053, 0
  %v1131 = vsel %vm1123, %v1054, 0
  %v1134 = vsel %vm1123, %v1055, 0
  %v1137 = vsel %vm1123, %v1056, 0
  %v1140 = vsel %vm1123, %v1057, 0
  %v1143 = vsel %vm1123, %v1058, 0
  %v1146 = vsel %vm1123, %v1059, 0
  %v1149 = vsel %vm1123, %v1060, 0
  %v1152 = vsel %vm1123, %v1061, 0
  %v1155 = vsel %vm1123, %v1062, 0
  %v1158 = vsel %vm1123, %v1063, 0
  %v1161 = vsel %vm1123, %v1064, 0
  %v1164 = vsel %vm1123, %v1065, 0
  %v1167 = vsel %vm1123, %v1066, 0
  %v1170 = vsel %vm1123, %v1067, 0
  %v1173 = vsel %vm1123, %v1068, 0
  %v1176 = vsel %vm1123, %v1069, 0
  %v1179 = vsel %vm1123, %v1070, 0
  %v1182 = vsel %vm1123, %v1071, 0
  %v1185 = vsel %vm1123, %v1072, 0
  %v1188 = vsel %vm1123, %v1073, 0
  %v1191 = vsel %vm1123, %v1074, 0
  %v1194 = vsel %vm1123, %v1075, 0
  %v1197 = vsel %vm1123, %v1076, 0
  %v1200 = vsel %vm1123, %v1077, 0
  %v1203 = vsel %vm1123, %v1078, 0
  %v1206 = vsel %vm1123, %v1079, 0
  %v1209 = vsel %vm1123, %v1080, 0
  %v1212 = vsel %vm1123, %v1081, 0
  %v1215 = vsel %vm1123, %v1082, 0
  %v1218 = vsel %vm1123, %v1083, 0
  %1220 = vmatprep.subr.bf16.mxu0 0
  %1221 = vmatpush1.bf16.msra.mxu0 %v1115
  %1222 = vmatprep.subr.bf16.mxu0 0
  %1223 = vmatpush1.bf16.msra.mxu0 %v1116
  %1224 = vmatprep.subr.bf16.mxu0 0
  %1225 = vmatpush1.bf16.msra.mxu0 %v1117
  %1226 = vmatprep.subr.bf16.mxu0 0
  %1227 = vmatpush1.bf16.msra.mxu0 %v1118
  %1228 = vmatprep.subr.bf16.mxu0 0
  %1229 = vmatpush1.bf16.msra.mxu0 0
  %1230 = vmatprep.subr.bf16.mxu0 0
  %1231 = vmatpush1.bf16.msra.mxu0 0
  %1232 = vmatprep.subr.bf16.mxu0 0
  %1233 = vmatpush1.bf16.msra.mxu0 0
  %1234 = vmatprep.subr.bf16.mxu0 0
  %1235 = vmatpush1.bf16.msra.mxu0 0
  %1236 = vmatprep.subr.bf16.mxu0 0
  %1237 = vmatpush1.bf16.msra.mxu0 0
  %1238 = vmatprep.subr.bf16.mxu0 0
  %1239 = vmatpush1.bf16.msra.mxu0 0
  %1240 = vmatprep.subr.bf16.mxu0 0
  %1241 = vmatpush1.bf16.msra.mxu0 0
  %1242 = vmatprep.subr.bf16.mxu0 0
  %1243 = vmatpush1.bf16.msra.mxu0 0
  %1244 = vmatprep.subr.bf16.mxu0 0
  %1245 = vmatpush1.bf16.msra.mxu0 0
  %1246 = vmatprep.subr.bf16.mxu0 0
  %1247 = vmatpush1.bf16.msra.mxu0 0
  %1248 = vmatprep.subr.bf16.mxu0 0
  %1249 = vmatpush1.bf16.msra.mxu0 0
  %1250 = vmatprep.subr.bf16.mxu0 0
  %1251 = vmatpush1.bf16.msra.mxu0 0
  %1252 = vmatprep.mubr.bf16.mxu0 0
  %1253 = vmatmul.mubr.bf16.gmra.mrb[0].mxu0 %v1125
  %v1254 = vpop.f32.mrb[0].mxu0
  %v1255 = vadd.f32 %v1097, %v1254
  %v1256 = vpop.f32.mrb[0].mxu0
  %v1257 = vpop.f32.mrb[0].mxu0
  %v1258 = vadd.f32 %v1097, %v1257
  %v1259 = vpop.f32.mrb[0].mxu0
  %1260 = vmatprep.mubr.bf16.mxu0 0
  %1261 = vmatmul.mubr.bf16.gmra.mrb[0].mxu0 %v1128
  %v1262 = vpop.f32.mrb[0].mxu0
  %v1263 = vadd.f32 %v1097, %v1262
  %v1264 = vpop.f32.mrb[0].mxu0
  %v1265 = vpop.f32.mrb[0].mxu0
  %v1266 = vadd.f32 %v1097, %v1265
  %v1267 = vpop.f32.mrb[0].mxu0
  %1268 = vmatprep.mubr.bf16.mxu0 0
  %1269 = vmatmul.mubr.bf16.gmra.mrb[0].mxu0 %v1131
  %v1270 = vpop.f32.mrb[0].mxu0
  %v1271 = vadd.f32 %v1097, %v1270
  %v1272 = vpop.f32.mrb[0].mxu0
  %v1273 = vpop.f32.mrb[0].mxu0
  %v1274 = vadd.f32 %v1097, %v1273
  %v1275 = vpop.f32.mrb[0].mxu0
  %1276 = vmatprep.mubr.bf16.mxu0 0
  %1277 = vmatmul.mubr.bf16.gmra.mrb[0].mxu0 %v1134
  %v1278 = vpop.f32.mrb[0].mxu0
  %v1279 = vadd.f32 %v1097, %v1278
  %v1280 = vpop.f32.mrb[0].mxu0
  %v1281 = vpop.f32.mrb[0].mxu0
  %v1282 = vadd.f32 %v1097, %v1281
  %v1283 = vpop.f32.mrb[0].mxu0
  %1284 = vmatprep.mubr.bf16.mxu0 0
  %1285 = vmatmul.mubr.bf16.gmra.mrb[0].mxu0 %v1137
  %v1286 = vpop.f32.mrb[0].mxu0
  %v1287 = vadd.f32 %v1097, %v1286
  %v1288 = vpop.f32.mrb[0].mxu0
  %v1289 = vpop.f32.mrb[0].mxu0
  %v1290 = vadd.f32 %v1097, %v1289
  %v1291 = vpop.f32.mrb[0].mxu0
  %1292 = vmatprep.mubr.bf16.mxu0 0
  %1293 = vmatmul.mubr.bf16.gmra.mrb[0].mxu0 %v1140
  %v1294 = vpop.f32.mrb[0].mxu0
  %v1295 = vadd.f32 %v1097, %v1294
  %v1296 = vpop.f32.mrb[0].mxu0
  %v1297 = vpop.f32.mrb[0].mxu0
  %v1298 = vadd.f32 %v1097, %v1297
  %v1299 = vpop.f32.mrb[0].mxu0
  %1300 = vmatprep.mubr.bf16.mxu0 0
  %1301 = vmatmul.mubr.bf16.gmra.mrb[0].mxu0 %v1143
  %v1302 = vpop.f32.mrb[0].mxu0
  %v1303 = vadd.f32 %v1097, %v1302
  %v1304 = vpop.f32.mrb[0].mxu0
  %v1305 = vpop.f32.mrb[0].mxu0
  %v1306 = vadd.f32 %v1097, %v1305
  %v1307 = vpop.f32.mrb[0].mxu0
  %1308 = vmatprep.mubr.bf16.mxu0 0
  %1309 = vmatmul.mubr.bf16.gmra.mrb[0].mxu0 %v1146
  %v1310 = vpop.f32.mrb[0].mxu0
  %v1311 = vadd.f32 %v1097, %v1310
  %v1312 = vpop.f32.mrb[0].mxu0
  %v1313 = vpop.f32.mrb[0].mxu0
  %v1314 = vadd.f32 %v1097, %v1313
  %v1315 = vpop.f32.mrb[0].mxu0
  %1316 = vmatprep.mubr.bf16.mxu0 0
  %1317 = vmatmul.mubr.bf16.gmra.mrb[0].mxu0 %v1149
  %v1318 = vpop.f32.mrb[0].mxu0
  %v1319 = vadd.f32 %v1097, %v1318
  %v1320 = vpop.f32.mrb[0].mxu0
  %v1321 = vpop.f32.mrb[0].mxu0
  %v1322 = vadd.f32 %v1097, %v1321
  %v1323 = vpop.f32.mrb[0].mxu0
  %1324 = vmatprep.mubr.bf16.mxu0 0
  %1325 = vmatmul.mubr.bf16.gmra.mrb[0].mxu0 %v1152
  %v1326 = vpop.f32.mrb[0].mxu0
  %v1327 = vadd.f32 %v1097, %v1326
  %v1328 = vpop.f32.mrb[0].mxu0
  %v1329 = vpop.f32.mrb[0].mxu0
  %v1330 = vadd.f32 %v1097, %v1329
  %v1331 = vpop.f32.mrb[0].mxu0
  %1332 = vmatprep.mubr.bf16.mxu0 0
  %1333 = vmatmul.mubr.bf16.gmra.mrb[0].mxu0 %v1155
  %v1334 = vpop.f32.mrb[0].mxu0
  %v1335 = vadd.f32 %v1097, %v1334
  %v1336 = vpop.f32.mrb[0].mxu0
  %v1337 = vpop.f32.mrb[0].mxu0
  %v1338 = vadd.f32 %v1097, %v1337
  %v1339 = vpop.f32.mrb[0].mxu0
  %1340 = vmatprep.mubr.bf16.mxu0 0
  %1341 = vmatmul.mubr.bf16.gmra.mrb[0].mxu0 %v1158
  %v1342 = vpop.f32.mrb[0].mxu0
  %v1343 = vadd.f32 %v1097, %v1342
  %v1344 = vpop.f32.mrb[0].mxu0
  %v1345 = vpop.f32.mrb[0].mxu0
  %v1346 = vadd.f32 %v1097, %v1345
  %v1347 = vpop.f32.mrb[0].mxu0
  %1348 = vmatprep.mubr.bf16.mxu0 0
  %1349 = vmatmul.mubr.bf16.gmra.mrb[0].mxu0 %v1161
  %v1350 = vpop.f32.mrb[0].mxu0
  %v1351 = vadd.f32 %v1097, %v1350
  %v1352 = vpop.f32.mrb[0].mxu0
  %v1353 = vpop.f32.mrb[0].mxu0
  %v1354 = vadd.f32 %v1097, %v1353
  %v1355 = vpop.f32.mrb[0].mxu0
  %1356 = vmatprep.mubr.bf16.mxu0 0
  %1357 = vmatmul.mubr.bf16.gmra.mrb[0].mxu0 %v1164
  %v1358 = vpop.f32.mrb[0].mxu0
  %v1359 = vadd.f32 %v1097, %v1358
  %v1360 = vpop.f32.mrb[0].mxu0
  %v1361 = vpop.f32.mrb[0].mxu0
  %v1362 = vadd.f32 %v1097, %v1361
  %v1363 = vpop.f32.mrb[0].mxu0
  %1364 = vmatprep.mubr.bf16.mxu0 0
  %1365 = vmatmul.mubr.bf16.gmra.mrb[0].mxu0 %v1167
  %v1366 = vpop.f32.mrb[0].mxu0
  %v1367 = vadd.f32 %v1097, %v1366
  %v1368 = vpop.f32.mrb[0].mxu0
  %v1369 = vpop.f32.mrb[0].mxu0
  %v1370 = vadd.f32 %v1097, %v1369
  %v1371 = vpop.f32.mrb[0].mxu0
  %1372 = vmatprep.mubr.bf16.mxu0 0
  %1373 = vmatmul.mubr.bf16.gmra.mrb[0].mxu0 %v1170
  %v1374 = vpop.f32.mrb[0].mxu0
  %v1375 = vadd.f32 %v1097, %v1374
  %v1376 = vpop.f32.mrb[0].mxu0
  %v1377 = vpop.f32.mrb[0].mxu0
  %v1378 = vadd.f32 %v1097, %v1377
  %v1379 = vpop.f32.mrb[0].mxu0
  %1380 = vmatprep.mubr.bf16.mxu0 0
  %1381 = vmatmul.mubr.bf16.gmra.mrb[0].mxu0 %v1173
  %v1382 = vpop.f32.mrb[0].mxu0
  %v1383 = vadd.f32 %v1097, %v1382
  %v1384 = vpop.f32.mrb[0].mxu0
  %v1385 = vpop.f32.mrb[0].mxu0
  %v1386 = vadd.f32 %v1097, %v1385
  %v1387 = vpop.f32.mrb[0].mxu0
  %1388 = vmatprep.mubr.bf16.mxu0 0
  %1389 = vmatmul.mubr.bf16.gmra.mrb[0].mxu0 %v1176
  %v1390 = vpop.f32.mrb[0].mxu0
  %v1391 = vadd.f32 %v1097, %v1390
  %v1392 = vpop.f32.mrb[0].mxu0
  %v1393 = vpop.f32.mrb[0].mxu0
  %v1394 = vadd.f32 %v1097, %v1393
  %v1395 = vpop.f32.mrb[0].mxu0
  %1396 = vmatprep.mubr.bf16.mxu0 0
  %1397 = vmatmul.mubr.bf16.gmra.mrb[0].mxu0 %v1179
  %v1398 = vpop.f32.mrb[0].mxu0
  %v1399 = vadd.f32 %v1097, %v1398
  %v1400 = vpop.f32.mrb[0].mxu0
  %v1401 = vpop.f32.mrb[0].mxu0
  %v1402 = vadd.f32 %v1097, %v1401
  %v1403 = vpop.f32.mrb[0].mxu0
  %1404 = vmatprep.mubr.bf16.mxu0 0
  %1405 = vmatmul.mubr.bf16.gmra.mrb[0].mxu0 %v1182
  %v1406 = vpop.f32.mrb[0].mxu0
  %v1407 = vadd.f32 %v1097, %v1406
  %v1408 = vpop.f32.mrb[0].mxu0
  %v1409 = vpop.f32.mrb[0].mxu0
  %v1410 = vadd.f32 %v1097, %v1409
  %v1411 = vpop.f32.mrb[0].mxu0
  %1412 = vmatprep.mubr.bf16.mxu0 0
  %1413 = vmatmul.mubr.bf16.gmra.mrb[0].mxu0 %v1185
  %v1414 = vpop.f32.mrb[0].mxu0
  %v1415 = vadd.f32 %v1097, %v1414
  %v1416 = vpop.f32.mrb[0].mxu0
  %v1417 = vpop.f32.mrb[0].mxu0
  %v1418 = vadd.f32 %v1097, %v1417
  %v1419 = vpop.f32.mrb[0].mxu0
  %1420 = vmatprep.mubr.bf16.mxu0 0
  %1421 = vmatmul.mubr.bf16.gmra.mrb[0].mxu0 %v1188
  %v1422 = vpop.f32.mrb[0].mxu0
  %v1423 = vadd.f32 %v1097, %v1422
  %v1424 = vpop.f32.mrb[0].mxu0
  %v1425 = vpop.f32.mrb[0].mxu0
  %v1426 = vadd.f32 %v1097, %v1425
  %v1427 = vpop.f32.mrb[0].mxu0
  %1428 = vmatprep.mubr.bf16.mxu0 0
  %1429 = vmatmul.mubr.bf16.gmra.mrb[0].mxu0 %v1191
  %v1430 = vpop.f32.mrb[0].mxu0
  %v1431 = vadd.f32 %v1097, %v1430
  %v1432 = vpop.f32.mrb[0].mxu0
  %v1433 = vpop.f32.mrb[0].mxu0
  %v1434 = vadd.f32 %v1097, %v1433
  %v1435 = vpop.f32.mrb[0].mxu0
  %1436 = vmatprep.mubr.bf16.mxu0 0
  %1437 = vmatmul.mubr.bf16.gmra.mrb[0].mxu0 %v1194
  %v1438 = vpop.f32.mrb[0].mxu0
  %v1439 = vadd.f32 %v1097, %v1438
  %v1440 = vpop.f32.mrb[0].mxu0
  %v1441 = vpop.f32.mrb[0].mxu0
  %v1442 = vadd.f32 %v1097, %v1441
  %v1443 = vpop.f32.mrb[0].mxu0
  %1444 = vmatprep.mubr.bf16.mxu0 0
  %1445 = vmatmul.mubr.bf16.gmra.mrb[0].mxu0 %v1197
  %v1446 = vpop.f32.mrb[0].mxu0
  %v1447 = vadd.f32 %v1097, %v1446
  %v1448 = vpop.f32.mrb[0].mxu0
  %v1449 = vpop.f32.mrb[0].mxu0
  %v1450 = vadd.f32 %v1097, %v1449
  %v1451 = vpop.f32.mrb[0].mxu0
  %1452 = vmatprep.mubr.bf16.mxu0 0
  %1453 = vmatmul.mubr.bf16.gmra.mrb[0].mxu0 %v1200
  %v1454 = vpop.f32.mrb[0].mxu0
  %v1455 = vadd.f32 %v1097, %v1454
  %v1456 = vpop.f32.mrb[0].mxu0
  %v1457 = vpop.f32.mrb[0].mxu0
  %v1458 = vadd.f32 %v1097, %v1457
  %v1459 = vpop.f32.mrb[0].mxu0
  %1460 = vmatprep.mubr.bf16.mxu0 0
  %1461 = vmatmul.mubr.bf16.gmra.mrb[0].mxu0 %v1203
  %v1462 = vpop.f32.mrb[0].mxu0
  %v1463 = vadd.f32 %v1097, %v1462
  %v1464 = vpop.f32.mrb[0].mxu0
  %v1465 = vpop.f32.mrb[0].mxu0
  %v1466 = vadd.f32 %v1097, %v1465
  %v1467 = vpop.f32.mrb[0].mxu0
  %1468 = vmatprep.mubr.bf16.mxu0 0
  %1469 = vmatmul.mubr.bf16.gmra.mrb[0].mxu0 %v1206
  %v1470 = vpop.f32.mrb[0].mxu0
  %v1471 = vadd.f32 %v1097, %v1470
  %v1472 = vpop.f32.mrb[0].mxu0
  %v1473 = vpop.f32.mrb[0].mxu0
  %v1474 = vadd.f32 %v1097, %v1473
  %v1475 = vpop.f32.mrb[0].mxu0
  %1476 = vmatprep.mubr.bf16.mxu0 0
  %1477 = vmatmul.mubr.bf16.gmra.mrb[0].mxu0 %v1209
  %v1478 = vpop.f32.mrb[0].mxu0
  %v1479 = vadd.f32 %v1097, %v1478
  %v1480 = vpop.f32.mrb[0].mxu0
  %v1481 = vpop.f32.mrb[0].mxu0
  %v1482 = vadd.f32 %v1097, %v1481
  %v1483 = vpop.f32.mrb[0].mxu0
  %1484 = vmatprep.mubr.bf16.mxu0 0
  %1485 = vmatmul.mubr.bf16.gmra.mrb[0].mxu0 %v1212
  %v1486 = vpop.f32.mrb[0].mxu0
  %v1487 = vadd.f32 %v1097, %v1486
  %v1488 = vpop.f32.mrb[0].mxu0
  %v1489 = vpop.f32.mrb[0].mxu0
  %v1490 = vadd.f32 %v1097, %v1489
  %v1491 = vpop.f32.mrb[0].mxu0
  %1492 = vmatprep.mubr.bf16.mxu0 0
  %1493 = vmatmul.mubr.bf16.gmra.mrb[0].mxu0 %v1215
  %v1494 = vpop.f32.mrb[0].mxu0
  %v1495 = vadd.f32 %v1097, %v1494
  %v1496 = vpop.f32.mrb[0].mxu0
  %v1497 = vpop.f32.mrb[0].mxu0
  %v1498 = vadd.f32 %v1097, %v1497
  %v1499 = vpop.f32.mrb[0].mxu0
  %1500 = vmatprep.mubr.bf16.mxu0 0
  %1501 = vmatmul.mubr.bf16.gmra.mrb[0].mxu0 %v1218
  %v1502 = vpop.f32.mrb[0].mxu0
  %v1503 = vadd.f32 %v1097, %v1502
  %v1504 = vpop.f32.mrb[0].mxu0
  %v1505 = vpop.f32.mrb[0].mxu0
  %v1506 = vadd.f32 %v1097, %v1505
  %v1507 = vpop.f32.mrb[0].mxu0
  %1508 = vdwg.mxu0
  %v1509 = vxor.u32 %v1255, 2147483648
  %v1510 = vxor.u32 %v1258, 2147483648
  %v1511 = vxor.u32 %v1263, 2147483648
  %v1512 = vxor.u32 %v1266, 2147483648
  %v1513 = vxor.u32 %v1271, 2147483648
  %v1514 = vxor.u32 %v1274, 2147483648
  %v1515 = vxor.u32 %v1279, 2147483648
  %v1516 = vxor.u32 %v1282, 2147483648
  %v1517 = vxor.u32 %v1287, 2147483648
  %v1518 = vxor.u32 %v1290, 2147483648
  %v1519 = vxor.u32 %v1295, 2147483648
  %v1520 = vxor.u32 %v1298, 2147483648
  %v1521 = vxor.u32 %v1303, 2147483648
  %v1522 = vxor.u32 %v1306, 2147483648
  %v1523 = vxor.u32 %v1311, 2147483648
  %v1524 = vxor.u32 %v1314, 2147483648
  %v1525 = vxor.u32 %v1319, 2147483648
  %v1526 = vxor.u32 %v1322, 2147483648
  %v1527 = vxor.u32 %v1327, 2147483648
  %v1528 = vxor.u32 %v1330, 2147483648
  %v1529 = vxor.u32 %v1335, 2147483648
  %v1530 = vxor.u32 %v1338, 2147483648
  %v1531 = vxor.u32 %v1343, 2147483648
  %v1532 = vxor.u32 %v1346, 2147483648
  %v1533 = vxor.u32 %v1351, 2147483648
  %v1534 = vxor.u32 %v1354, 2147483648
  %v1535 = vxor.u32 %v1359, 2147483648
  %v1536 = vxor.u32 %v1362, 2147483648
  %v1537 = vxor.u32 %v1367, 2147483648
  %v1538 = vxor.u32 %v1370, 2147483648
  %v1539 = vxor.u32 %v1375, 2147483648
  %v1540 = vxor.u32 %v1378, 2147483648
  %v1541 = vxor.u32 %v1383, 2147483648
  %v1542 = vxor.u32 %v1386, 2147483648
  %v1543 = vxor.u32 %v1391, 2147483648
  %v1544 = vxor.u32 %v1394, 2147483648
  %v1545 = vxor.u32 %v1399, 2147483648
  %v1546 = vxor.u32 %v1402, 2147483648
  %v1547 = vxor.u32 %v1407, 2147483648
  %v1548 = vxor.u32 %v1410, 2147483648
  %v1549 = vxor.u32 %v1415, 2147483648
  %v1550 = vxor.u32 %v1418, 2147483648
  %v1551 = vxor.u32 %v1423, 2147483648
  %v1552 = vxor.u32 %v1426, 2147483648
  %v1553 = vxor.u32 %v1431, 2147483648
  %v1554 = vxor.u32 %v1434, 2147483648
  %v1555 = vxor.u32 %v1439, 2147483648
  %v1556 = vxor.u32 %v1442, 2147483648
  %v1557 = vxor.u32 %v1447, 2147483648
  %v1558 = vxor.u32 %v1450, 2147483648
  %v1559 = vxor.u32 %v1455, 2147483648
  %v1560 = vxor.u32 %v1458, 2147483648
  %v1561 = vxor.u32 %v1463, 2147483648
  %v1562 = vxor.u32 %v1466, 2147483648
  %v1563 = vxor.u32 %v1471, 2147483648
  %v1564 = vxor.u32 %v1474, 2147483648
  %v1565 = vxor.u32 %v1479, 2147483648
  %v1566 = vxor.u32 %v1482, 2147483648
  %v1567 = vxor.u32 %v1487, 2147483648
  %v1568 = vxor.u32 %v1490, 2147483648
  %v1569 = vxor.u32 %v1495, 2147483648
  %v1570 = vxor.u32 %v1498, 2147483648
  %v1571 = vxor.u32 %v1503, 2147483648
  %v1572 = vxor.u32 %v1506, 2147483648
  %v1573 = vmul.f32 %v1509, 1.442695
  %v1574 = vpow.pop %v1573
  %v1575 = vmul.f32 %v1510, 1.442695
  %v1576 = vpow.pop %v1575
  %v1577 = vmul.f32 %v1511, 1.442695
  %v1578 = vpow.pop %v1577
  %v1579 = vmul.f32 %v1512, 1.442695
  %v1580 = vpow.pop %v1579
  %v1581 = vmul.f32 %v1513, 1.442695
  %v1582 = vpow.pop %v1581
  %v1583 = vmul.f32 %v1514, 1.442695
  %v1584 = vpow.pop %v1583
  %v1585 = vmul.f32 %v1515, 1.442695
  %v1586 = vpow.pop %v1585
  %v1587 = vmul.f32 %v1516, 1.442695
  %v1588 = vpow.pop %v1587
  %v1589 = vmul.f32 %v1517, 1.442695
  %v1590 = vpow.pop %v1589
  %v1591 = vmul.f32 %v1518, 1.442695
  %v1592 = vpow.pop %v1591
  %v1593 = vmul.f32 %v1519, 1.442695
  %v1594 = vpow.pop %v1593
  %v1595 = vmul.f32 %v1520, 1.442695
  %v1596 = vpow.pop %v1595
  %v1597 = vmul.f32 %v1521, 1.442695
  %v1598 = vpow.pop %v1597
  %v1599 = vmul.f32 %v1522, 1.442695
  %v1600 = vpow.pop %v1599
  %v1601 = vmul.f32 %v1523, 1.442695
  %v1602 = vpow.pop %v1601
  %v1603 = vmul.f32 %v1524, 1.442695
  %v1604 = vpow.pop %v1603
  %v1605 = vmul.f32 %v1525, 1.442695
  %v1606 = vpow.pop %v1605
  %v1607 = vmul.f32 %v1526, 1.442695
  %v1608 = vpow.pop %v1607
  %v1609 = vmul.f32 %v1527, 1.442695
  %v1610 = vpow.pop %v1609
  %v1611 = vmul.f32 %v1528, 1.442695
  %v1612 = vpow.pop %v1611
  %v1613 = vmul.f32 %v1529, 1.442695
  %v1614 = vpow.pop %v1613
  %v1615 = vmul.f32 %v1530, 1.442695
  %v1616 = vpow.pop %v1615
  %v1617 = vmul.f32 %v1531, 1.442695
  %v1618 = vpow.pop %v1617
  %v1619 = vmul.f32 %v1532, 1.442695
  %v1620 = vpow.pop %v1619
  %v1621 = vmul.f32 %v1533, 1.442695
  %v1622 = vpow.pop %v1621
  %v1623 = vmul.f32 %v1534, 1.442695
  %v1624 = vpow.pop %v1623
  %v1625 = vmul.f32 %v1535, 1.442695
  %v1626 = vpow.pop %v1625
  %v1627 = vmul.f32 %v1536, 1.442695
  %v1628 = vpow.pop %v1627
  %v1629 = vmul.f32 %v1537, 1.442695
  %v1630 = vpow.pop %v1629
  %v1631 = vmul.f32 %v1538, 1.442695
  %v1632 = vpow.pop %v1631
  %v1633 = vmul.f32 %v1539, 1.442695
  %v1634 = vpow.pop %v1633
  %v1635 = vmul.f32 %v1540, 1.442695
  %v1636 = vpow.pop %v1635
  %v1637 = vmul.f32 %v1541, 1.442695
  %v1638 = vpow.pop %v1637
  %v1639 = vmul.f32 %v1542, 1.442695
  %v1640 = vpow.pop %v1639
  %v1641 = vmul.f32 %v1543, 1.442695
  %v1642 = vpow.pop %v1641
  %v1643 = vmul.f32 %v1544, 1.442695
  %v1644 = vpow.pop %v1643
  %v1645 = vmul.f32 %v1545, 1.442695
  %v1646 = vpow.pop %v1645
  %v1647 = vmul.f32 %v1546, 1.442695
  %v1648 = vpow.pop %v1647
  %v1649 = vmul.f32 %v1547, 1.442695
  %v1650 = vpow.pop %v1649
  %v1651 = vmul.f32 %v1548, 1.442695
  %v1652 = vpow.pop %v1651
  %v1653 = vmul.f32 %v1549, 1.442695
  %v1654 = vpow.pop %v1653
  %v1655 = vmul.f32 %v1550, 1.442695
  %v1656 = vpow.pop %v1655
  %v1657 = vmul.f32 %v1551, 1.442695
  %v1658 = vpow.pop %v1657
  %v1659 = vmul.f32 %v1552, 1.442695
  %v1660 = vpow.pop %v1659
  %v1661 = vmul.f32 %v1553, 1.442695
  %v1662 = vpow.pop %v1661
  %v1663 = vmul.f32 %v1554, 1.442695
  %v1664 = vpow.pop %v1663
  %v1665 = vmul.f32 %v1555, 1.442695
  %v1666 = vpow.pop %v1665
  %v1667 = vmul.f32 %v1556, 1.442695
  %v1668 = vpow.pop %v1667
  %v1669 = vmul.f32 %v1557, 1.442695
  %v1670 = vpow.pop %v1669
  %v1671 = vmul.f32 %v1558, 1.442695
  %v1672 = vpow.pop %v1671
  %v1673 = vmul.f32 %v1559, 1.442695
  %v1674 = vpow.pop %v1673
  %v1675 = vmul.f32 %v1560, 1.442695
  %v1676 = vpow.pop %v1675
  %v1677 = vmul.f32 %v1561, 1.442695
  %v1678 = vpow.pop %v1677
  %v1679 = vmul.f32 %v1562, 1.442695
  %v1680 = vpow.pop %v1679
  %v1681 = vmul.f32 %v1563, 1.442695
  %v1682 = vpow.pop %v1681
  %v1683 = vmul.f32 %v1564, 1.442695
  %v1684 = vpow.pop %v1683
  %v1685 = vmul.f32 %v1565, 1.442695
  %v1686 = vpow.pop %v1685
  %v1687 = vmul.f32 %v1566, 1.442695
  %v1688 = vpow.pop %v1687
  %v1689 = vmul.f32 %v1567, 1.442695
  %v1690 = vpow.pop %v1689
  %v1691 = vmul.f32 %v1568, 1.442695
  %v1692 = vpow.pop %v1691
  %v1693 = vmul.f32 %v1569, 1.442695
  %v1694 = vpow.pop %v1693
  %v1695 = vmul.f32 %v1570, 1.442695
  %v1696 = vpow.pop %v1695
  %v1697 = vmul.f32 %v1571, 1.442695
  %v1698 = vpow.pop %v1697
  %v1699 = vmul.f32 %v1572, 1.442695
  %v1700 = vpow.pop %v1699
  %v1701 = vadd.f32 %v1574, 1.0
  %v1702 = vadd.f32 %v1576, 1.0
  %v1703 = vadd.f32 %v1578, 1.0
  %v1704 = vadd.f32 %v1580, 1.0
  %v1705 = vadd.f32 %v1582, 1.0
  %v1706 = vadd.f32 %v1584, 1.0
  %v1707 = vadd.f32 %v1586, 1.0
  %v1708 = vadd.f32 %v1588, 1.0
  %v1709 = vadd.f32 %v1590, 1.0
  %v1710 = vadd.f32 %v1592, 1.0
  %v1711 = vadd.f32 %v1594, 1.0
  %v1712 = vadd.f32 %v1596, 1.0
  %v1713 = vadd.f32 %v1598, 1.0
  %v1714 = vadd.f32 %v1600, 1.0
  %v1715 = vadd.f32 %v1602, 1.0
  %v1716 = vadd.f32 %v1604, 1.0
  %v1717 = vadd.f32 %v1606, 1.0
  %v1718 = vadd.f32 %v1608, 1.0
  %v1719 = vadd.f32 %v1610, 1.0
  %v1720 = vadd.f32 %v1612, 1.0
  %v1721 = vadd.f32 %v1614, 1.0
  %v1722 = vadd.f32 %v1616, 1.0
  %v1723 = vadd.f32 %v1618, 1.0
  %v1724 = vadd.f32 %v1620, 1.0
  %v1725 = vadd.f32 %v1622, 1.0
  %v1726 = vadd.f32 %v1624, 1.0
  %v1727 = vadd.f32 %v1626, 1.0
  %v1728 = vadd.f32 %v1628, 1.0
  %v1729 = vadd.f32 %v1630, 1.0
  %v1730 = vadd.f32 %v1632, 1.0
  %v1731 = vadd.f32 %v1634, 1.0
  %v1732 = vadd.f32 %v1636, 1.0
  %v1733 = vadd.f32 %v1638, 1.0
  %v1734 = vadd.f32 %v1640, 1.0
  %v1735 = vadd.f32 %v1642, 1.0
  %v1736 = vadd.f32 %v1644, 1.0
  %v1737 = vadd.f32 %v1646, 1.0
  %v1738 = vadd.f32 %v1648, 1.0
  %v1739 = vadd.f32 %v1650, 1.0
  %v1740 = vadd.f32 %v1652, 1.0
  %v1741 = vadd.f32 %v1654, 1.0
  %v1742 = vadd.f32 %v1656, 1.0
  %v1743 = vadd.f32 %v1658, 1.0
  %v1744 = vadd.f32 %v1660, 1.0
  %v1745 = vadd.f32 %v1662, 1.0
  %v1746 = vadd.f32 %v1664, 1.0
  %v1747 = vadd.f32 %v1666, 1.0
  %v1748 = vadd.f32 %v1668, 1.0
  %v1749 = vadd.f32 %v1670, 1.0
  %v1750 = vadd.f32 %v1672, 1.0
  %v1751 = vadd.f32 %v1674, 1.0
  %v1752 = vadd.f32 %v1676, 1.0
  %v1753 = vadd.f32 %v1678, 1.0
  %v1754 = vadd.f32 %v1680, 1.0
  %v1755 = vadd.f32 %v1682, 1.0
  %v1756 = vadd.f32 %v1684, 1.0
  %v1757 = vadd.f32 %v1686, 1.0
  %v1758 = vadd.f32 %v1688, 1.0
  %v1759 = vadd.f32 %v1690, 1.0
  %v1760 = vadd.f32 %v1692, 1.0
  %v1761 = vadd.f32 %v1694, 1.0
  %v1762 = vadd.f32 %v1696, 1.0
  %v1763 = vadd.f32 %v1698, 1.0
  %v1764 = vadd.f32 %v1700, 1.0
  %v1765 = vrcp.pop %v1701
  %v1766 = vmul.f32 1.0, %v1765
  %v1767 = vrcp.pop %v1702
  %v1768 = vmul.f32 1.0, %v1767
  %v1769 = vrcp.pop %v1703
  %v1770 = vmul.f32 1.0, %v1769
  %v1771 = vrcp.pop %v1704
  %v1772 = vmul.f32 1.0, %v1771
  %v1773 = vrcp.pop %v1705
  %v1774 = vmul.f32 1.0, %v1773
  %v1775 = vrcp.pop %v1706
  %v1776 = vmul.f32 1.0, %v1775
  %v1777 = vrcp.pop %v1707
  %v1778 = vmul.f32 1.0, %v1777
  %v1779 = vrcp.pop %v1708
  %v1780 = vmul.f32 1.0, %v1779
  %v1781 = vrcp.pop %v1709
  %v1782 = vmul.f32 1.0, %v1781
  %v1783 = vrcp.pop %v1710
  %v1784 = vmul.f32 1.0, %v1783
  %v1785 = vrcp.pop %v1711
  %v1786 = vmul.f32 1.0, %v1785
  %v1787 = vrcp.pop %v1712
  %v1788 = vmul.f32 1.0, %v1787
  %v1789 = vrcp.pop %v1713
  %v1790 = vmul.f32 1.0, %v1789
  %v1791 = vrcp.pop %v1714
  %v1792 = vmul.f32 1.0, %v1791
  %v1793 = vrcp.pop %v1715
  %v1794 = vmul.f32 1.0, %v1793
  %v1795 = vrcp.pop %v1716
  %v1796 = vmul.f32 1.0, %v1795
  %v1797 = vrcp.pop %v1717
  %v1798 = vmul.f32 1.0, %v1797
  %v1799 = vrcp.pop %v1718
  %v1800 = vmul.f32 1.0, %v1799
  %v1801 = vrcp.pop %v1719
  %v1802 = vmul.f32 1.0, %v1801
  %v1803 = vrcp.pop %v1720
  %v1804 = vmul.f32 1.0, %v1803
  %v1805 = vrcp.pop %v1721
  %v1806 = vmul.f32 1.0, %v1805
  %v1807 = vrcp.pop %v1722
  %v1808 = vmul.f32 1.0, %v1807
  %v1809 = vrcp.pop %v1723
  %v1810 = vmul.f32 1.0, %v1809
  %v1811 = vrcp.pop %v1724
  %v1812 = vmul.f32 1.0, %v1811
  %v1813 = vrcp.pop %v1725
  %v1814 = vmul.f32 1.0, %v1813
  %v1815 = vrcp.pop %v1726
  %v1816 = vmul.f32 1.0, %v1815
  %v1817 = vrcp.pop %v1727
  %v1818 = vmul.f32 1.0, %v1817
  %v1819 = vrcp.pop %v1728
  %v1820 = vmul.f32 1.0, %v1819
  %v1821 = vrcp.pop %v1729
  %v1822 = vmul.f32 1.0, %v1821
  %v1823 = vrcp.pop %v1730
  %v1824 = vmul.f32 1.0, %v1823
  %v1825 = vrcp.pop %v1731
  %v1826 = vmul.f32 1.0, %v1825
  %v1827 = vrcp.pop %v1732
  %v1828 = vmul.f32 1.0, %v1827
  %v1829 = vrcp.pop %v1733
  %v1830 = vmul.f32 1.0, %v1829
  %v1831 = vrcp.pop %v1734
  %v1832 = vmul.f32 1.0, %v1831
  %v1833 = vrcp.pop %v1735
  %v1834 = vmul.f32 1.0, %v1833
  %v1835 = vrcp.pop %v1736
  %v1836 = vmul.f32 1.0, %v1835
  %v1837 = vrcp.pop %v1737
  %v1838 = vmul.f32 1.0, %v1837
  %v1839 = vrcp.pop %v1738
  %v1840 = vmul.f32 1.0, %v1839
  %v1841 = vrcp.pop %v1739
  %v1842 = vmul.f32 1.0, %v1841
  %v1843 = vrcp.pop %v1740
  %v1844 = vmul.f32 1.0, %v1843
  %v1845 = vrcp.pop %v1741
  %v1846 = vmul.f32 1.0, %v1845
  %v1847 = vrcp.pop %v1742
  %v1848 = vmul.f32 1.0, %v1847
  %v1849 = vrcp.pop %v1743
  %v1850 = vmul.f32 1.0, %v1849
  %v1851 = vrcp.pop %v1744
  %v1852 = vmul.f32 1.0, %v1851
  %v1853 = vrcp.pop %v1745
  %v1854 = vmul.f32 1.0, %v1853
  %v1855 = vrcp.pop %v1746
  %v1856 = vmul.f32 1.0, %v1855
  %v1857 = vrcp.pop %v1747
  %v1858 = vmul.f32 1.0, %v1857
  %v1859 = vrcp.pop %v1748
  %v1860 = vmul.f32 1.0, %v1859
  %v1861 = vrcp.pop %v1749
  %v1862 = vmul.f32 1.0, %v1861
  %v1863 = vrcp.pop %v1750
  %v1864 = vmul.f32 1.0, %v1863
  %v1865 = vrcp.pop %v1751
  %v1866 = vmul.f32 1.0, %v1865
  %v1867 = vrcp.pop %v1752
  %v1868 = vmul.f32 1.0, %v1867
  %v1869 = vrcp.pop %v1753
  %v1870 = vmul.f32 1.0, %v1869
  %v1871 = vrcp.pop %v1754
  %v1872 = vmul.f32 1.0, %v1871
  %v1873 = vrcp.pop %v1755
  %v1874 = vmul.f32 1.0, %v1873
  %v1875 = vrcp.pop %v1756
  %v1876 = vmul.f32 1.0, %v1875
  %v1877 = vrcp.pop %v1757
  %v1878 = vmul.f32 1.0, %v1877
  %v1879 = vrcp.pop %v1758
  %v1880 = vmul.f32 1.0, %v1879
  %v1881 = vrcp.pop %v1759
  %v1882 = vmul.f32 1.0, %v1881
  %v1883 = vrcp.pop %v1760
  %v1884 = vmul.f32 1.0, %v1883
  %v1885 = vrcp.pop %v1761
  %v1886 = vmul.f32 1.0, %v1885
  %v1887 = vrcp.pop %v1762
  %v1888 = vmul.f32 1.0, %v1887
  %v1889 = vrcp.pop %v1763
  %v1890 = vmul.f32 1.0, %v1889
  %v1891 = vrcp.pop %v1764
  %v1892 = vmul.f32 1.0, %v1891
  %v1893 = vpack.c.bf16 %v1768, %v1766
  %v1894 = vpack.c.bf16 %v1772, %v1770
  %v1895 = vpack.c.bf16 %v1776, %v1774
  %v1896 = vpack.c.bf16 %v1780, %v1778
  %v1897 = vpack.c.bf16 %v1784, %v1782
  %v1898 = vpack.c.bf16 %v1788, %v1786
  %v1899 = vpack.c.bf16 %v1792, %v1790
  %v1900 = vpack.c.bf16 %v1796, %v1794
  %v1901 = vpack.c.bf16 %v1800, %v1798
  %v1902 = vpack.c.bf16 %v1804, %v1802
  %v1903 = vpack.c.bf16 %v1808, %v1806
  %v1904 = vpack.c.bf16 %v1812, %v1810
  %v1905 = vpack.c.bf16 %v1816, %v1814
  %v1906 = vpack.c.bf16 %v1820, %v1818
  %v1907 = vpack.c.bf16 %v1824, %v1822
  %v1908 = vpack.c.bf16 %v1828, %v1826
  %v1909 = vpack.c.bf16 %v1832, %v1830
  %v1910 = vpack.c.bf16 %v1836, %v1834
  %v1911 = vpack.c.bf16 %v1840, %v1838
  %v1912 = vpack.c.bf16 %v1844, %v1842
  %v1913 = vpack.c.bf16 %v1848, %v1846
  %v1914 = vpack.c.bf16 %v1852, %v1850
  %v1915 = vpack.c.bf16 %v1856, %v1854
  %v1916 = vpack.c.bf16 %v1860, %v1858
  %v1917 = vpack.c.bf16 %v1864, %v1862
  %v1918 = vpack.c.bf16 %v1868, %v1866
  %v1919 = vpack.c.bf16 %v1872, %v1870
  %v1920 = vpack.c.bf16 %v1876, %v1874
  %v1921 = vpack.c.bf16 %v1880, %v1878
  %v1922 = vpack.c.bf16 %v1884, %v1882
  %v1923 = vpack.c.bf16 %v1888, %v1886
  %v1924 = vpack.c.bf16 %v1892, %v1890
  %v1957 = vunpack.c.l.b16 %v1893
  %v1958 = vunpack.c.h.b16 %v1893
  %v1959 = vunpack.c.l.b16 %v1894
  %v1960 = vunpack.c.h.b16 %v1894
  %v1961 = vunpack.c.l.b16 %v1895
  %v1962 = vunpack.c.h.b16 %v1895
  %v1963 = vunpack.c.l.b16 %v1896
  %v1964 = vunpack.c.h.b16 %v1896
  %v1965 = vunpack.c.l.b16 %v1897
  %v1966 = vunpack.c.h.b16 %v1897
  %v1967 = vunpack.c.l.b16 %v1898
  %v1968 = vunpack.c.h.b16 %v1898
  %v1969 = vunpack.c.l.b16 %v1899
  %v1970 = vunpack.c.h.b16 %v1899
  %v1971 = vunpack.c.l.b16 %v1900
  %v1972 = vunpack.c.h.b16 %v1900
  %v1973 = vunpack.c.l.b16 %v1901
  %v1974 = vunpack.c.h.b16 %v1901
  %v1975 = vunpack.c.l.b16 %v1902
  %v1976 = vunpack.c.h.b16 %v1902
  %v1977 = vunpack.c.l.b16 %v1903
  %v1978 = vunpack.c.h.b16 %v1903
  %v1979 = vunpack.c.l.b16 %v1904
  %v1980 = vunpack.c.h.b16 %v1904
  %v1981 = vunpack.c.l.b16 %v1905
  %v1982 = vunpack.c.h.b16 %v1905
  %v1983 = vunpack.c.l.b16 %v1906
  %v1984 = vunpack.c.h.b16 %v1906
  %v1985 = vunpack.c.l.b16 %v1907
  %v1986 = vunpack.c.h.b16 %v1907
  %v1987 = vunpack.c.l.b16 %v1908
  %v1988 = vunpack.c.h.b16 %v1908
  %v1989 = vunpack.c.l.b16 %v1909
  %v1990 = vunpack.c.h.b16 %v1909
  %v1991 = vunpack.c.l.b16 %v1910
  %v1992 = vunpack.c.h.b16 %v1910
  %v1993 = vunpack.c.l.b16 %v1911
  %v1994 = vunpack.c.h.b16 %v1911
  %v1995 = vunpack.c.l.b16 %v1912
  %v1996 = vunpack.c.h.b16 %v1912
  %v1997 = vunpack.c.l.b16 %v1913
  %v1998 = vunpack.c.h.b16 %v1913
  %v1999 = vunpack.c.l.b16 %v1914
  %v2000 = vunpack.c.h.b16 %v1914
  %v2001 = vunpack.c.l.b16 %v1915
  %v2002 = vunpack.c.h.b16 %v1915
  %v2003 = vunpack.c.l.b16 %v1916
  %v2004 = vunpack.c.h.b16 %v1916
  %v2005 = vunpack.c.l.b16 %v1917
  %v2006 = vunpack.c.h.b16 %v1917
  %v2007 = vunpack.c.l.b16 %v1918
  %v2008 = vunpack.c.h.b16 %v1918
  %v2009 = vunpack.c.l.b16 %v1919
  %v2010 = vunpack.c.h.b16 %v1919
  %v2011 = vunpack.c.l.b16 %v1920
  %v2012 = vunpack.c.h.b16 %v1920
  %v2013 = vunpack.c.l.b16 %v1921
  %v2014 = vunpack.c.h.b16 %v1921
  %v2015 = vunpack.c.l.b16 %v1922
  %v2016 = vunpack.c.h.b16 %v1922
  %v2017 = vunpack.c.l.b16 %v1923
  %v2018 = vunpack.c.h.b16 %v1923
  %v2019 = vunpack.c.l.b16 %v1924
  %v2020 = vunpack.c.h.b16 %v1924
  %v2021 = vpack.c.b16 %v1957, %v1957
  %v2022 = vpack.c.b16 %v1958, %v1958
  %v2023 = vpack.c.b16 %v1959, %v1959
  %v2024 = vpack.c.b16 %v1960, %v1960
  %v2025 = vpack.c.b16 %v1961, %v1961
  %v2026 = vpack.c.b16 %v1962, %v1962
  %v2027 = vpack.c.b16 %v1963, %v1963
  %v2028 = vpack.c.b16 %v1964, %v1964
  %v2029 = vpack.c.b16 %v1965, %v1965
  %v2030 = vpack.c.b16 %v1966, %v1966
  %v2031 = vpack.c.b16 %v1967, %v1967
  %v2032 = vpack.c.b16 %v1968, %v1968
  %v2033 = vpack.c.b16 %v1969, %v1969
  %v2034 = vpack.c.b16 %v1970, %v1970
  %v2035 = vpack.c.b16 %v1971, %v1971
  %v2036 = vpack.c.b16 %v1972, %v1972
  %v2037 = vpack.c.b16 %v1973, %v1973
  %v2038 = vpack.c.b16 %v1974, %v1974
  %v2039 = vpack.c.b16 %v1975, %v1975
  %v2040 = vpack.c.b16 %v1976, %v1976
  %v2041 = vpack.c.b16 %v1977, %v1977
  %v2042 = vpack.c.b16 %v1978, %v1978
  %v2043 = vpack.c.b16 %v1979, %v1979
  %v2044 = vpack.c.b16 %v1980, %v1980
  %v2045 = vpack.c.b16 %v1981, %v1981
  %v2046 = vpack.c.b16 %v1982, %v1982
  %v2047 = vpack.c.b16 %v1983, %v1983
  %v2048 = vpack.c.b16 %v1984, %v1984
  %v2049 = vpack.c.b16 %v1985, %v1985
  %v2050 = vpack.c.b16 %v1986, %v1986
  %v2051 = vpack.c.b16 %v1987, %v1987
  %v2052 = vpack.c.b16 %v1988, %v1988
  %v2053 = vpack.c.b16 %v1989, %v1989
  %v2054 = vpack.c.b16 %v1990, %v1990
  %v2055 = vpack.c.b16 %v1991, %v1991
  %v2056 = vpack.c.b16 %v1992, %v1992
  %v2057 = vpack.c.b16 %v1993, %v1993
  %v2058 = vpack.c.b16 %v1994, %v1994
  %v2059 = vpack.c.b16 %v1995, %v1995
  %v2060 = vpack.c.b16 %v1996, %v1996
  %v2061 = vpack.c.b16 %v1997, %v1997
  %v2062 = vpack.c.b16 %v1998, %v1998
  %v2063 = vpack.c.b16 %v1999, %v1999
  %v2064 = vpack.c.b16 %v2000, %v2000
  %v2065 = vpack.c.b16 %v2001, %v2001
  %v2066 = vpack.c.b16 %v2002, %v2002
  %v2067 = vpack.c.b16 %v2003, %v2003
  %v2068 = vpack.c.b16 %v2004, %v2004
  %v2069 = vpack.c.b16 %v2005, %v2005
  %v2070 = vpack.c.b16 %v2006, %v2006
  %v2071 = vpack.c.b16 %v2007, %v2007
  %v2072 = vpack.c.b16 %v2008, %v2008
  %v2073 = vpack.c.b16 %v2009, %v2009
  %v2074 = vpack.c.b16 %v2010, %v2010
  %v2075 = vpack.c.b16 %v2011, %v2011
  %v2076 = vpack.c.b16 %v2012, %v2012
  %v2077 = vpack.c.b16 %v2013, %v2013
  %v2078 = vpack.c.b16 %v2014, %v2014
  %v2079 = vpack.c.b16 %v2015, %v2015
  %v2080 = vpack.c.b16 %v2016, %v2016
  %v2081 = vpack.c.b16 %v2017, %v2017
  %v2082 = vpack.c.b16 %v2018, %v2018
  %v2083 = vpack.c.b16 %v2019, %v2019
  %v2084 = vpack.c.b16 %v2020, %v2020
  %vm2149 = vcmask 60416
  %2150 = vst.msk [vmem:[%s7] sm:$0xf] %vm2149, %v2021
  %2151 = vst.msk [vmem:[%s7 + $0x4] sm:$0xf] %vm2149, %v2022
  %2152 = vst.msk [vmem:[%s7 + $0x8] sm:$0xf] %vm2149, %v2023
  %2153 = vst.msk [vmem:[%s7 + $0xc] sm:$0xf] %vm2149, %v2024
  %2154 = vst.msk [vmem:[%s7 + $0x10] sm:$0xf] %vm2149, %v2025
  %2155 = vst.msk [vmem:[%s7 + $0x14] sm:$0xf] %vm2149, %v2026
  %2156 = vst.msk [vmem:[%s7 + $0x18] sm:$0xf] %vm2149, %v2027
  %2157 = vst.msk [vmem:[%s7 + $0x1c] sm:$0xf] %vm2149, %v2028
  %2158 = vst.msk [vmem:[%s7 + $0x20] sm:$0xf] %vm2149, %v2029
  %2159 = vst.msk [vmem:[%s7 + $0x24] sm:$0xf] %vm2149, %v2030
  %2160 = vst.msk [vmem:[%s7 + $0x28] sm:$0xf] %vm2149, %v2031
  %2161 = vst.msk [vmem:[%s7 + $0x2c] sm:$0xf] %vm2149, %v2032
  %2162 = vst.msk [vmem:[%s7 + $0x30] sm:$0xf] %vm2149, %v2033
  %2163 = vst.msk [vmem:[%s7 + $0x34] sm:$0xf] %vm2149, %v2034
  %2164 = vst.msk [vmem:[%s7 + $0x38] sm:$0xf] %vm2149, %v2035
  %2165 = vst.msk [vmem:[%s7 + $0x3c] sm:$0xf] %vm2149, %v2036
  %2166 = vst.msk [vmem:[%s7 + $0x40] sm:$0xf] %vm2149, %v2037
  %2167 = vst.msk [vmem:[%s7 + $0x44] sm:$0xf] %vm2149, %v2038
  %2168 = vst.msk [vmem:[%s7 + $0x48] sm:$0xf] %vm2149, %v2039
  %2169 = vst.msk [vmem:[%s7 + $0x4c] sm:$0xf] %vm2149, %v2040
  %2170 = vst.msk [vmem:[%s7 + $0x50] sm:$0xf] %vm2149, %v2041
  %2171 = vst.msk [vmem:[%s7 + $0x54] sm:$0xf] %vm2149, %v2042
  %2172 = vst.msk [vmem:[%s7 + $0x58] sm:$0xf] %vm2149, %v2043
  %2173 = vst.msk [vmem:[%s7 + $0x5c] sm:$0xf] %vm2149, %v2044
  %2174 = vst.msk [vmem:[%s7 + $0x60] sm:$0xf] %vm2149, %v2045
  %2175 = vst.msk [vmem:[%s7 + $0x64] sm:$0xf] %vm2149, %v2046
  %2176 = vst.msk [vmem:[%s7 + $0x68] sm:$0xf] %vm2149, %v2047
  %2177 = vst.msk [vmem:[%s7 + $0x6c] sm:$0xf] %vm2149, %v2048
  %2178 = vst.msk [vmem:[%s7 + $0x70] sm:$0xf] %vm2149, %v2049
  %2179 = vst.msk [vmem:[%s7 + $0x74] sm:$0xf] %vm2149, %v2050
  %2180 = vst.msk [vmem:[%s7 + $0x78] sm:$0xf] %vm2149, %v2051
  %2181 = vst.msk [vmem:[%s7 + $0x7c] sm:$0xf] %vm2149, %v2052
  %2182 = vst.msk [vmem:[%s7 + $0x80] sm:$0xf] %vm2149, %v2053
  %2183 = vst.msk [vmem:[%s7 + $0x84] sm:$0xf] %vm2149, %v2054
  %2184 = vst.msk [vmem:[%s7 + $0x88] sm:$0xf] %vm2149, %v2055
  %2185 = vst.msk [vmem:[%s7 + $0x8c] sm:$0xf] %vm2149, %v2056
  %2186 = vst.msk [vmem:[%s7 + $0x90] sm:$0xf] %vm2149, %v2057
  %2187 = vst.msk [vmem:[%s7 + $0x94] sm:$0xf] %vm2149, %v2058
  %2188 = vst.msk [vmem:[%s7 + $0x98] sm:$0xf] %vm2149, %v2059
  %2189 = vst.msk [vmem:[%s7 + $0x9c] sm:$0xf] %vm2149, %v2060
  %2190 = vst.msk [vmem:[%s7 + $0xa0] sm:$0xf] %vm2149, %v2061
  %2191 = vst.msk [vmem:[%s7 + $0xa4] sm:$0xf] %vm2149, %v2062
  %2192 = vst.msk [vmem:[%s7 + $0xa8] sm:$0xf] %vm2149, %v2063
  %2193 = vst.msk [vmem:[%s7 + $0xac] sm:$0xf] %vm2149, %v2064
  %2194 = vst.msk [vmem:[%s7 + $0xb0] sm:$0xf] %vm2149, %v2065
  %2195 = vst.msk [vmem:[%s7 + $0xb4] sm:$0xf] %vm2149, %v2066
  %2196 = vst.msk [vmem:[%s7 + $0xb8] sm:$0xf] %vm2149, %v2067
  %2197 = vst.msk [vmem:[%s7 + $0xbc] sm:$0xf] %vm2149, %v2068
  %2198 = vst.msk [vmem:[%s7 + $0xc0] sm:$0xf] %vm2149, %v2069
  %2199 = vst.msk [vmem:[%s7 + $0xc4] sm:$0xf] %vm2149, %v2070
  %2200 = vst.msk [vmem:[%s7 + $0xc8] sm:$0xf] %vm2149, %v2071
  %2201 = vst.msk [vmem:[%s7 + $0xcc] sm:$0xf] %vm2149, %v2072
  %2202 = vst.msk [vmem:[%s7 + $0xd0] sm:$0xf] %vm2149, %v2073
  %2203 = vst.msk [vmem:[%s7 + $0xd4] sm:$0xf] %vm2149, %v2074
  %2204 = vst.msk [vmem:[%s7 + $0xd8] sm:$0xf] %vm2149, %v2075
  %2205 = vst.msk [vmem:[%s7 + $0xdc] sm:$0xf] %vm2149, %v2076
  %2206 = vst.msk [vmem:[%s7 + $0xe0] sm:$0xf] %vm2149, %v2077
  %2207 = vst.msk [vmem:[%s7 + $0xe4] sm:$0xf] %vm2149, %v2078
  %2208 = vst.msk [vmem:[%s7 + $0xe8] sm:$0xf] %vm2149, %v2079
  %2209 = vst.msk [vmem:[%s7 + $0xec] sm:$0xf] %vm2149, %v2080
  %2210 = vst.msk [vmem:[%s7 + $0xf0] sm:$0xf] %vm2149, %v2081
  %2211 = vst.msk [vmem:[%s7 + $0xf4] sm:$0xf] %vm2149, %v2082
  %2212 = vst.msk [vmem:[%s7 + $0xf8] sm:$0xf] %vm2149, %v2083
  %2213 = vst.msk [vmem:[%s7 + $0xfc] sm:$0xf] %vm2149, %v2084
  // Predicated region
  $region30: #{tpu_custom_call.1} parent=0 // pred_check
    _
  $region31: #{tpu_custom_call.1} parent=0 // pred_check_branch
    %2215 = sbr.rel (0) target = $region33
  $region32: #{tpu_custom_call.1} parent=0 // pred_region
    _
  $region33: #{tpu_custom_call.1} parent=0 // pred_fallthru
    _
  // Predicated region
  $region34: #{tpu_custom_call.1} parent=0 // pred_check
    _
  $region35: #{tpu_custom_call.1} parent=0 // pred_check_branch
    %2217 = sbr.rel (0) target = $region37
  $region36: #{tpu_custom_call.1} parent=0 // pred_region
    _
  $region37: #{tpu_custom_call.1} parent=0 // pred_fallthru
    _

</llo_original>
